<compile_context>
chip_gen: v7x
topology: tpu7x:2x2x1
jax: 0.10.0
libtpu: 0.0.40
codegen_flags: <defaults>
</compile_context>

<pallas_src>
import math

import jax
import jax.numpy as jnp
from jax import lax
from jax.experimental import pallas as pl
from jax.experimental.pallas import tpu as pltpu


def _round_up(x, m):
    return ((x + m - 1) // m) * m


def _round_down(x, m):
    return (x // m) * m


def _make_predict_atom_kernel(n_terms, dn):
    """Operand order:
         x_0..x_{T-1} : per-term feature tiles
         w_0..w_{T-1} : per-term weights (grid-resident, constant index_map)
         b            : (n_target, 1) summed bias (grid-resident)
         out          : (n_target, tn) lane-dense output tile (atoms on lanes)
    """
    def kernel(*refs):
        x_refs = refs[:n_terms]
        w_refs = refs[n_terms:2 * n_terms]
        b_ref = refs[2 * n_terms]
        o_ref = refs[2 * n_terms + 1]

        acc = lax.dot_general(w_refs[0][...], x_refs[0][...], dn,
                              preferred_element_type=jnp.float32)
        for w_r, x_r in zip(w_refs[1:], x_refs[1:]):
            acc = acc + lax.dot_general(w_r[...], x_r[...], dn,
                                        preferred_element_type=jnp.float32)
        o_ref[...] = (acc + b_ref[...]).astype(o_ref.dtype)

    return kernel


def predict_atom_pallas(all_features, weights, biases, *,
                        features_transposed=False,
                        input_dtype=None,
                        target_tn=1024,
                        vmem_budget_bytes=12 * 1024 * 1024,
                        single_buffer_resident=True,
                        split_for_two_cores=True):
    """
    all_features: list of per-term feature arrays.
                  features_transposed=False -> [N, nf_i]  (PyTorch module layout)
                  features_transposed=True  -> [nf_i, N]  (recommended producer layout:
                                               atoms land on the 128-lane axis)
    weights:      list of [n_target, nf_i] arrays (PyTorch Linear .weight layout)
    biases:       list of Optional[[n_target]] arrays (None => no bias for that term)
    input_dtype:  optional dtype (e.g. jnp.bfloat16) to cast features+weights to;
                  best done at the producer.  Accumulation is always f32.
    Returns:      [N, n_target] float32 (same as the PyTorch forward)
    """
    n_terms = len(all_features)
    assert n_terms == len(weights) == len(biases) and n_terms >= 1

    if features_transposed:
        N = all_features[0].shape[1]
        feature_sizes = tuple(x.shape[0] for x in all_features)
    else:
        N = all_features[0].shape[0]
        feature_sizes = tuple(x.shape[1] for x in all_features)
    n_target = weights[0].shape[0]
    k_total = sum(feature_sizes)

    xs = list(all_features)
    ws = list(weights)
    if input_dtype is not None:
        xs = [x.astype(input_dtype) for x in xs]
        ws = [w.astype(input_dtype) for w in ws]
    feat_itemsize = jnp.dtype(xs[0].dtype).itemsize

    # Sum the per-term biases once (terms without a bias contribute nothing).
    b_sum = jnp.zeros((n_target, 1), jnp.float32)
    for b in biases:
        if b is not None:
            b_sum = b_sum + b.reshape(n_target, 1).astype(jnp.float32)

    # ----- tile selection ------------------------------------------------------------
    n_target_pad = _round_up(n_target, 8)                       # f32 output sublanes
    feat_sublane = 8 * max(1, 4 // feat_itemsize)               # 8 (f32) / 16 (bf16)
    N_pad = _round_up(N, 128)

    tn = min(max(128, _round_up(target_tn, 128)), N_pad)
    if split_for_two_cores and N_pad >= 256:
        # v7x has 2 TensorCores per chip: keep >= 2 grid steps so ("parallel",) can
        # shard work across them.  Neutral on single-TC v5e/v6e.
        tn = min(tn, max(128, _round_down(N_pad // 2, 128)))

    w_bufs = 1 if single_buffer_resident else 2

    def _step_bytes(t):
        # Padded, per-generation-safe VMEM footprint of one pipelined step.
        bts = 0
        for nf in feature_sizes:
            bts += 2 * feat_itemsize * _round_up(nf, feat_sublane) * t   # 2x feature tiles
        bts += 2 * 4 * n_target_pad * t                                   # 2x f32 out tile
        for nf in feature_sizes:
            bts += w_bufs * feat_itemsize * _round_up(n_target, feat_sublane) \
                   * _round_up(nf, 128)                                   # resident weights
        bts += w_bufs * 4 * n_target_pad * 128                            # resident bias
        return bts

    while tn > 128 and _step_bytes(tn) > vmem_budget_bytes:
        tn -= 128

    grid = (pl.cdiv(N, tn),)  # ragged last block: Pallas masks the writeback

    # ----- specs & contraction dims --------------------------------------------------
    if features_transposed:
        # w[n_target, nf] @ x[nf, tn] -> out[n_target, tn]
        dn = (((1,), (0,)), ((), ()))
    else:
        # contract feature axes of w[n_target, nf] and x[tn, nf] -> out[n_target, tn]
        dn = (((1,), (1,)), ((), ()))

    def _build_specs(use_single_buffer):
        resident_kw = {"pipeline_mode": pl.Buffered(1)} if use_single_buffer else {}
        in_specs = []
        if features_transposed:
            for nf in feature_sizes:
                in_specs.append(pl.BlockSpec((nf, tn), lambda i: (0, i)))
        else:
            for nf in feature_sizes:
                in_specs.append(pl.BlockSpec((tn, nf), lambda i: (i, 0)))
        for nf in feature_sizes:
            in_specs.append(pl.BlockSpec((n_target, nf), lambda i: (0, 0), **resident_kw))
        in_specs.append(pl.BlockSpec((n_target, 1), lambda i: (0, 0), **resident_kw))
        out_spec = pl.BlockSpec((n_target, tn), lambda i: (0, i))  # lane-dense output
        return in_specs, out_spec

    cost = pl.CostEstimate(
        flops=2 * N * k_total * n_target,
        transcendentals=0,
        bytes_accessed=(feat_itemsize * (N * k_total + k_total * n_target)
                        + 4 * (n_target + N * n_target)),
    )

    def _run(use_single_buffer):
        in_specs, out_spec = _build_specs(use_single_buffer)
        return pl.pallas_call(
            _make_predict_atom_kernel(n_terms, dn),
            out_shape=jax.ShapeDtypeStruct((n_target, N), jnp.float32),
            grid=grid,
            in_specs=in_specs,
            out_specs=out_spec,
            compiler_params=pltpu.CompilerParams(
                dimension_semantics=("parallel",)),
            cost_estimate=cost,
        )(*xs, *ws, b_sum)

    if single_buffer_resident:
        try:
            out_t = _run(True)
        except Exception:
            # pipeline_mode unsupported in this JAX build -> default double-buffering.
            out_t = _run(False)
    else:
        out_t = _run(False)

    return out_t.T  # [N, n_target] -- matches the PyTorch module's output layout


def init_predict_atom_params(key, feature_sizes, n_target=1, first_is_interacting=False):
    """Deterministic init mirroring torch.nn.Linear default (uniform +-1/sqrt(fan_in))."""
    bias_flags = (first_is_interacting,) + tuple(True for _ in range(len(feature_sizes) - 1))
    weights, biases = [], []
    for nf, has_bias in zip(feature_sizes, bias_flags):
        key, kw, kb = jax.random.split(key, 3)
        bound = 1.0 / math.sqrt(nf)
        w = jax.random.uniform(kw, (n_target, nf), jnp.float32, -bound, bound)
        b = (jax.random.uniform(kb, (n_target,), jnp.float32, -bound, bound)
             if has_bias else None)
        weights.append(w)
        biases.append(b)
    return weights, biases


if __name__ == "__main__":
    key = jax.random.PRNGKey(0)

    feature_sizes = (32, 16, 8)
    n_target = 1
    first_is_interacting = False
    N_atoms = 1000  # deliberately NOT a multiple of 128/tn -> exercises the ragged path

    kparams, *kfeat = jax.random.split(key, 1 + len(feature_sizes))
    weights, biases = init_predict_atom_params(
        kparams, feature_sizes, n_target=n_target,
        first_is_interacting=first_is_interacting)

    # Module-layout features ([N, nf_i]) — exactly what the PyTorch forward receives.
    all_features = [
        jax.random.normal(kf, (N_atoms, nf), jnp.float32)
        for kf, nf in zip(kfeat, feature_sizes)
    ]
    # Producer-transposed copies ([nf_i, N]) for the lane-dense fast path.
    all_features_t = [x.T for x in all_features]

    # Reference (plain JAX) forward of the PyTorch module.
    ref = jnp.zeros((N_atoms, n_target), jnp.float32)
    for x, w, b in zip(all_features, weights, biases):
        y = x @ w.T
        if b is not None:
            y = y + b
        ref = ref + y

    # 1) Recommended path: producer-transposed features, f32.
    out = predict_atom_pallas(all_features_t, weights, biases, features_transposed=True)
    out = jax.block_until_ready(out)
    assert out.shape == (N_atoms, n_target)
    assert jnp.allclose(out, ref, atol=1e-4, rtol=1e-4), "transposed-path mismatch"

    # 2) Module-native layout ([N, nf_i]) path — identical semantics.
    out2 = predict_atom_pallas(all_features, weights, biases, features_transposed=False)
    out2 = jax.block_until_ready(out2)
    assert jnp.allclose(out2, ref, atol=1e-4, rtol=1e-4), "module-layout-path mismatch"

    # 3) bf16 inputs (halves HBM bytes; f32 accumulation) — loose tolerance.
    out3 = predict_atom_pallas(all_features_t, weights, biases,
                               features_transposed=True, input_dtype=jnp.bfloat16)
    out3 = jax.block_until_ready(out3)
    assert jnp.allclose(out3, ref, atol=8e-2, rtol=5e-2), "bf16-path mismatch"

    print("KERNEL_OK")
</pallas_src>

<mosaic_0001>
module attributes {stable_mosaic.version = 11 : i64} {
  func.func @kernel(%arg0: i32, %arg1: memref<32x512xf32, #tpu.memory_space<vmem>>, %arg2: memref<16x512xf32, #tpu.memory_space<vmem>>, %arg3: memref<8x512xf32, #tpu.memory_space<vmem>>, %arg4: memref<1x32xf32, #tpu.memory_space<vmem>>, %arg5: memref<1x16xf32, #tpu.memory_space<vmem>>, %arg6: memref<1x8xf32, #tpu.memory_space<vmem>>, %arg7: memref<1x1xf32, #tpu.memory_space<vmem>>, %arg8: memref<1x512xf32, #tpu.memory_space<vmem>>) attributes {dimension_semantics = [#tpu.dimension_semantics<parallel>], iteration_bounds = array<i64: 2>, scalar_prefetch = 0 : i64, scratch_operands = 0 : i64, tpu.core_type = #tpu.core_type<tc>, window_params = [{transform_indices = @transform_0, window_bounds = array<i64: 32, 512>}, {transform_indices = @transform_1, window_bounds = array<i64: 16, 512>}, {transform_indices = @transform_2, window_bounds = array<i64: 8, 512>}, {pipeline_mode = #tpu.pipeline_mode<synchronous>, transform_indices = @transform_3, window_bounds = array<i64: 1, 32>}, {pipeline_mode = #tpu.pipeline_mode<synchronous>, transform_indices = @transform_4, window_bounds = array<i64: 1, 16>}, {pipeline_mode = #tpu.pipeline_mode<synchronous>, transform_indices = @transform_5, window_bounds = array<i64: 1, 8>}, {pipeline_mode = #tpu.pipeline_mode<synchronous>, transform_indices = @transform_6, window_bounds = array<i64: 1, 1>}, {transform_indices = @transform_7, window_bounds = array<i64: 1, 512>}]} {
    %c0 = arith.constant 0 : index
    %c0_0 = arith.constant 0 : index
    %0 = vector.load %arg4[%c0, %c0_0] : memref<1x32xf32, #tpu.memory_space<vmem>>, vector<1x32xf32>
    %c0_1 = arith.constant 0 : index
    %c0_2 = arith.constant 0 : index
    %1 = vector.load %arg1[%c0_1, %c0_2] : memref<32x512xf32, #tpu.memory_space<vmem>>, vector<32x512xf32>
    %cst = arith.constant dense<0.000000e+00> : vector<1x512xf32>
    %2 = tpu.matmul %0, %1, %cst {dimension_numbers = #tpu.dot_dimension_numbers<[1], [0], [0], [1], [0, 0, 1, 1], [], []>} : vector<1x32xf32>, vector<32x512xf32>, vector<1x512xf32> -> vector<1x512xf32>
    %c0_3 = arith.constant 0 : index
    %c0_4 = arith.constant 0 : index
    %3 = vector.load %arg5[%c0_3, %c0_4] : memref<1x16xf32, #tpu.memory_space<vmem>>, vector<1x16xf32>
    %c0_5 = arith.constant 0 : index
    %c0_6 = arith.constant 0 : index
    %4 = vector.load %arg2[%c0_5, %c0_6] : memref<16x512xf32, #tpu.memory_space<vmem>>, vector<16x512xf32>
    %cst_7 = arith.constant dense<0.000000e+00> : vector<1x512xf32>
    %5 = tpu.matmul %3, %4, %cst_7 {dimension_numbers = #tpu.dot_dimension_numbers<[1], [0], [0], [1], [0, 0, 1, 1], [], []>} : vector<1x16xf32>, vector<16x512xf32>, vector<1x512xf32> -> vector<1x512xf32>
    %6 = arith.addf %2, %5 : vector<1x512xf32>
    %c0_8 = arith.constant 0 : index
    %c0_9 = arith.constant 0 : index
    %7 = vector.load %arg6[%c0_8, %c0_9] : memref<1x8xf32, #tpu.memory_space<vmem>>, vector<1x8xf32>
    %c0_10 = arith.constant 0 : index
    %c0_11 = arith.constant 0 : index
    %8 = vector.load %arg3[%c0_10, %c0_11] : memref<8x512xf32, #tpu.memory_space<vmem>>, vector<8x512xf32>
    %cst_12 = arith.constant dense<0.000000e+00> : vector<1x512xf32>
    %9 = tpu.matmul %7, %8, %cst_12 {dimension_numbers = #tpu.dot_dimension_numbers<[1], [0], [0], [1], [0, 0, 1, 1], [], []>} : vector<1x8xf32>, vector<8x512xf32>, vector<1x512xf32> -> vector<1x512xf32>
    %10 = arith.addf %6, %9 : vector<1x512xf32>
    %c0_13 = arith.constant 0 : index
    %c0_14 = arith.constant 0 : index
    %11 = vector.load %arg7[%c0_13, %c0_14] : memref<1x1xf32, #tpu.memory_space<vmem>>, vector<1x1xf32>
    %12 = vector.broadcast %11 : vector<1x1xf32> to vector<1x512xf32>
    %13 = arith.addf %10, %12 : vector<1x512xf32>
    %c0_15 = arith.constant 0 : index
    %c0_16 = arith.constant 0 : index
    %14 = vector.load %arg8[%c0_15, %c0_16] : memref<1x512xf32, #tpu.memory_space<vmem>>, vector<1x512xf32>
    tpu.vector_store %arg8[%c0_15, %c0_16], %13 {strides = array<i32>} : memref<1x512xf32, #tpu.memory_space<vmem>>, vector<1x512xf32>,
    return
  }
  func.func @transform_0(%arg0: i32) -> (i32, i32) {
    %c0_i32 = arith.constant 0 : i32
    %c0_i32_0 = arith.constant 0 : i32
    return %c0_i32, %arg0 : i32, i32
  }
  func.func @transform_1(%arg0: i32) -> (i32, i32) {
    %c0_i32 = arith.constant 0 : i32
    %c0_i32_0 = arith.constant 0 : i32
    return %c0_i32, %arg0 : i32, i32
  }
  func.func @transform_2(%arg0: i32) -> (i32, i32) {
    %c0_i32 = arith.constant 0 : i32
    %c0_i32_0 = arith.constant 0 : i32
    return %c0_i32, %arg0 : i32, i32
  }
  func.func @transform_3(%arg0: i32) -> (i32, i32) {
    %c0_i32 = arith.constant 0 : i32
    %c0_i32_0 = arith.constant 0 : i32
    %c0_i32_1 = arith.constant 0 : i32
    return %c0_i32, %c0_i32_0 : i32, i32
  }
  func.func @transform_4(%arg0: i32) -> (i32, i32) {
    %c0_i32 = arith.constant 0 : i32
    %c0_i32_0 = arith.constant 0 : i32
    %c0_i32_1 = arith.constant 0 : i32
    return %c0_i32, %c0_i32_0 : i32, i32
  }
  func.func @transform_5(%arg0: i32) -> (i32, i32) {
    %c0_i32 = arith.constant 0 : i32
    %c0_i32_0 = arith.constant 0 : i32
    %c0_i32_1 = arith.constant 0 : i32
    return %c0_i32, %c0_i32_0 : i32, i32
  }
  func.func @transform_6(%arg0: i32) -> (i32, i32) {
    %c0_i32 = arith.constant 0 : i32
    %c0_i32_0 = arith.constant 0 : i32
    %c0_i32_1 = arith.constant 0 : i32
    return %c0_i32, %c0_i32_0 : i32, i32
  }
  func.func @transform_7(%arg0: i32) -> (i32, i32) {
    %c0_i32 = arith.constant 0 : i32
    %c0_i32_0 = arith.constant 0 : i32
    return %c0_i32, %arg0 : i32, i32
  }
}

module attributes {stable_mosaic.version = 11 : i64} {
  func.func @kernel(%arg0: i32, %arg1: memref<32x512xf32, #tpu.memory_space<vmem>>, %arg2: memref<16x512xf32, #tpu.memory_space<vmem>>, %arg3: memref<8x512xf32, #tpu.memory_space<vmem>>, %arg4: memref<1x32xf32, #tpu.memory_space<vmem>>, %arg5: memref<1x16xf32, #tpu.memory_space<vmem>>, %arg6: memref<1x8xf32, #tpu.memory_space<vmem>>, %arg7: memref<1x1xf32, #tpu.memory_space<vmem>>, %arg8: memref<1x512xf32, #tpu.memory_space<vmem>>) attributes {dimension_semantics = [#tpu.dimension_semantics<parallel>], iteration_bounds = array<i64: 2>, scalar_prefetch = 0 : i64, scratch_operands = 0 : i64, tpu.core_type = #tpu.core_type<tc>, window_params = [{transform_indices = @transform_0, window_bounds = array<i64: 32, 512>}, {transform_indices = @transform_1, window_bounds = array<i64: 16, 512>}, {transform_indices = @transform_2, window_bounds = array<i64: 8, 512>}, {pipeline_mode = #tpu.pipeline_mode<synchronous>, transform_indices = @transform_3, window_bounds = array<i64: 1, 32>}, {pipeline_mode = #tpu.pipeline_mode<synchronous>, transform_indices = @transform_4, window_bounds = array<i64: 1, 16>}, {pipeline_mode = #tpu.pipeline_mode<synchronous>, transform_indices = @transform_5, window_bounds = array<i64: 1, 8>}, {pipeline_mode = #tpu.pipeline_mode<synchronous>, transform_indices = @transform_6, window_bounds = array<i64: 1, 1>}, {transform_indices = @transform_7, window_bounds = array<i64: 1, 512>}]} {
    %c0 = arith.constant 0 : index
    %c0_0 = arith.constant 0 : index
    %0 = vector.load %arg4[%c0, %c0_0] : memref<1x32xf32, #tpu.memory_space<vmem>>, vector<1x32xf32>
    %c0_1 = arith.constant 0 : index
    %c0_2 = arith.constant 0 : index
    %1 = vector.load %arg1[%c0_1, %c0_2] : memref<32x512xf32, #tpu.memory_space<vmem>>, vector<32x512xf32>
    %cst = arith.constant dense<0.000000e+00> : vector<1x512xf32>
    %2 = tpu.matmul %0, %1, %cst {dimension_numbers = #tpu.dot_dimension_numbers<[1], [0], [0], [1], [0, 0, 1, 1], [], []>} : vector<1x32xf32>, vector<32x512xf32>, vector<1x512xf32> -> vector<1x512xf32>
    %c0_3 = arith.constant 0 : index
    %c0_4 = arith.constant 0 : index
    %3 = vector.load %arg5[%c0_3, %c0_4] : memref<1x16xf32, #tpu.memory_space<vmem>>, vector<1x16xf32>
    %c0_5 = arith.constant 0 : index
    %c0_6 = arith.constant 0 : index
    %4 = vector.load %arg2[%c0_5, %c0_6] : memref<16x512xf32, #tpu.memory_space<vmem>>, vector<16x512xf32>
    %cst_7 = arith.constant dense<0.000000e+00> : vector<1x512xf32>
    %5 = tpu.matmul %3, %4, %cst_7 {dimension_numbers = #tpu.dot_dimension_numbers<[1], [0], [0], [1], [0, 0, 1, 1], [], []>} : vector<1x16xf32>, vector<16x512xf32>, vector<1x512xf32> -> vector<1x512xf32>
    %6 = arith.addf %2, %5 : vector<1x512xf32>
    %c0_8 = arith.constant 0 : index
    %c0_9 = arith.constant 0 : index
    %7 = vector.load %arg6[%c0_8, %c0_9] : memref<1x8xf32, #tpu.memory_space<vmem>>, vector<1x8xf32>
    %c0_10 = arith.constant 0 : index
    %c0_11 = arith.constant 0 : index
    %8 = vector.load %arg3[%c0_10, %c0_11] : memref<8x512xf32, #tpu.memory_space<vmem>>, vector<8x512xf32>
    %cst_12 = arith.constant dense<0.000000e+00> : vector<1x512xf32>
    %9 = tpu.matmul %7, %8, %cst_12 {dimension_numbers = #tpu.dot_dimension_numbers<[1], [0], [0], [1], [0, 0, 1, 1], [], []>} : vector<1x8xf32>, vector<8x512xf32>, vector<1x512xf32> -> vector<1x512xf32>
    %10 = arith.addf %6, %9 : vector<1x512xf32>
    %c0_13 = arith.constant 0 : index
    %c0_14 = arith.constant 0 : index
    %11 = vector.load %arg7[%c0_13, %c0_14] : memref<1x1xf32, #tpu.memory_space<vmem>>, vector<1x1xf32>
    %12 = vector.broadcast %11 : vector<1x1xf32> to vector<1x512xf32>
    %13 = arith.addf %10, %12 : vector<1x512xf32>
    %c0_15 = arith.constant 0 : index
    %c0_16 = arith.constant 0 : index
    %14 = vector.load %arg8[%c0_15, %c0_16] : memref<1x512xf32, #tpu.memory_space<vmem>>, vector<1x512xf32>
    tpu.vector_store %arg8[%c0_15, %c0_16], %13 {strides = array<i32>} : memref<1x512xf32, #tpu.memory_space<vmem>>, vector<1x512xf32>,
    return
  }
  func.func @transform_0(%arg0: i32) -> (i32, i32) {
    %c0_i32 = arith.constant 0 : i32
    %c0_i32_0 = arith.constant 0 : i32
    return %c0_i32, %arg0 : i32, i32
  }
  func.func @transform_1(%arg0: i32) -> (i32, i32) {
    %c0_i32 = arith.constant 0 : i32
    %c0_i32_0 = arith.constant 0 : i32
    return %c0_i32, %arg0 : i32, i32
  }
  func.func @transform_2(%arg0: i32) -> (i32, i32) {
    %c0_i32 = arith.constant 0 : i32
    %c0_i32_0 = arith.constant 0 : i32
    return %c0_i32, %arg0 : i32, i32
  }
  func.func @transform_3(%arg0: i32) -> (i32, i32) {
    %c0_i32 = arith.constant 0 : i32
    %c0_i32_0 = arith.constant 0 : i32
    %c0_i32_1 = arith.constant 0 : i32
    return %c0_i32, %c0_i32_0 : i32, i32
  }
  func.func @transform_4(%arg0: i32) -> (i32, i32) {
    %c0_i32 = arith.constant 0 : i32
    %c0_i32_0 = arith.constant 0 : i32
    %c0_i32_1 = arith.constant 0 : i32
    return %c0_i32, %c0_i32_0 : i32, i32
  }
  func.func @transform_5(%arg0: i32) -> (i32, i32) {
    %c0_i32 = arith.constant 0 : i32
    %c0_i32_0 = arith.constant 0 : i32
    %c0_i32_1 = arith.constant 0 : i32
    return %c0_i32, %c0_i32_0 : i32, i32
  }
  func.func @transform_6(%arg0: i32) -> (i32, i32) {
    %c0_i32 = arith.constant 0 : i32
    %c0_i32_0 = arith.constant 0 : i32
    %c0_i32_1 = arith.constant 0 : i32
    return %c0_i32, %c0_i32_0 : i32, i32
  }
  func.func @transform_7(%arg0: i32) -> (i32, i32) {
    %c0_i32 = arith.constant 0 : i32
    %c0_i32_0 = arith.constant 0 : i32
    return %c0_i32, %arg0 : i32, i32
  }
}

</mosaic_0001>

<llo_original>
// kernel: tpu_custom_call.1
$region0: #{tpu_custom_call.1}
  #allocation0 [shape = 'u32[]', space=smem, size = 0x4, offset = 0x4, fixed_abs, tag = 'smem constant byte address 0x4 - core index']
  #allocation1 [shape = 'u32[144,128]{1,0:T(1,128)}', space=vmem, size = 0x12000, scoped, tag = 'internal scratch']
  #allocation2 [shape = 'f32[1,1]{1,0:T(1,128)S(1)}', space=vmem, size = 0x200, scoped, tag = 'scoped memory for tpu_custom_call.1']
  %s0 = inlined_call_operand.hbm [shape: f32[32,1000], index: 0, kind: input, shape index: {}]
  %s1 = inlined_call_operand.hbm [shape: f32[16,1000], index: 1, kind: input, shape index: {}]
  %s2 = inlined_call_operand.hbm [shape: f32[8,1000], index: 2, kind: input, shape index: {}]
  %s3 = inlined_call_operand.vmem [shape: f32[1,32], index: 3, kind: input, shape index: {}]
  %s4 = inlined_call_operand.vmem [shape: f32[1,16], index: 4, kind: input, shape index: {}]
  %s5 = inlined_call_operand.vmem [shape: f32[1,8], index: 5, kind: input, shape index: {}]
  %s6 = inlined_call_operand.<no memory space> [shape: f32[1,1], index: 6, kind: input, shape index: {}]
  %s7 = inlined_call_operand.hbm [shape: f32[1,1000], index: 7, kind: output, shape index: {}]
  %s8 = sld [smem:[#allocation0]]
  $region73: #{tpu_custom_call.1} parent=0
    _
  %s10 = ssub.s32 1, %s8
  %s11 = scalar_select 0, %s10, %s8
  %v12 = vstv %s6
  %13 = vst [vmem:[#allocation2] sm:$0x1] %v12
  $region1: #{tpu_custom_call.1} parent=0
    #allocation3 [shape = 'u8[131072]{0}', space=vmem, size = 0x20000, scoped, tag = 'input window, operand 0']
    #allocation4 [shape = 's32[2]{0}', space=sflag, size = 0x8, scoped, tag = 'scoped memory for tpu_custom_call.1']
    #allocation5 [shape = 's32[2]{0}', space=sflag, size = 0x8, scoped, tag = 'scoped memory for tpu_custom_call.1']
    #allocation6 [shape = 'u8[65536]{0}', space=vmem, size = 0x10000, scoped, tag = 'input window, operand 1']
    #allocation7 [shape = 's32[2]{0}', space=sflag, size = 0x8, scoped, tag = 'scoped memory for tpu_custom_call.1']
    #allocation8 [shape = 'u8[32768]{0}', space=vmem, size = 0x8000, scoped, tag = 'input window, operand 2']
    #allocation9 [shape = 'u8[4096]{0}', space=vmem, size = 0x1000, scoped, tag = 'output window, operand 0']
    %14 = vsyncpa [#allocation4], 0
    %s15 = scalar_lea.sflag [#allocation4], 1
    %16 = vsyncpa %s15, 0
    %17 = vsyncpa [#allocation7], 0
    %s18 = scalar_lea.sflag [#allocation7], 1
    %19 = vsyncpa %s18, 0
    %20 = vsyncpa [#allocation5], 0
    %s21 = scalar_lea.sflag [#allocation5], 1
    %22 = vsyncpa %s21, 0
    loop: start=0, step=1, limit=4
    $region2: #{tpu_custom_call.1} parent=1 // loop_pre_header
      _
    $region3: #{tpu_custom_call.1} parent=1 // loop_header
      %s24 = sphi 0, %s28
      %p25 = scmp.ge.s32.totalorder %s24, 4
      %s34 = sphi 0, %s36
      %s37 = sphi 0, %s34
      %s38 = sphi 0, %s37
      %s54 = sphi 0, %s38
      %s60 = sphi 0, %s62
      %s63 = sphi 0, %s60
      %s64 = sphi 0, %s63
      %s80 = sphi 0, %s64
      %s86 = sphi 0, %s88
      %s89 = sphi 0, %s86
      %s90 = sphi 0, %s89
      %s106 = sphi 0, %s90
      %s110 = sphi 0, %s110
      %s112 = sphi 0, %s110
      %s113 = sphi 0, %s112
      %s127 = sphi 0, %s113
      %s131 = sphi 0, %s131
      %s133 = sphi 0, %s131
      %s134 = sphi 0, %s133
      %s148 = sphi 0, %s134
      %s152 = sphi 0, %s152
      %s154 = sphi 0, %s152
      %s155 = sphi 0, %s154
      %s169 = sphi 0, %s155
      %s173 = sphi 0, %s173
      %s175 = sphi 0, %s173
      %s176 = sphi 0, %s175
      %s190 = sphi 0, %s176
      %s196 = sphi 0, %s198
      %s199 = sphi 0, %s196
      %s200 = sphi 0, %s199
      %s216 = sphi 0, %s200
    $region4: #{tpu_custom_call.1} parent=1 // loop_header_branch
      %27 = sbr.rel (%p25) target = $region8
    $region5: #{tpu_custom_call.1} parent=1 // loop_body
      %s29 = ssub.s32 %s24, 1
      %s30 = ssub.s32 %s24, 2
      %s31 = sadd.s32 %s24, 1
      %s32 = ssub.s32 %s24, %s31
      %p33 = scmp.eq.s32.totalorder %s32, 0
      %s35 = sadd.s32 %s34, 1
      %s36 = scalar_select %p33, %s34, %s35
      %p39 = pneg %p33
      %p40 = scmp.eq.s32.totalorder %s24, 1
      %p41 = por %p39, %p40
      %p42 = scmp.ne.s32.totalorder %s34, %s37
      %p43 = scmp.eq.s32.totalorder %s24, 0
      %p44 = por %p42, %p43
      %p45 = scmp.ne.s32.totalorder %s34, %s37
      %p46 = scmp.eq.s32.totalorder %s29, 1
      %p47 = por %p45, %p46
      %p48 = scmp.ne.s32.totalorder %s37, %s38
      %p49 = scmp.eq.s32.totalorder %s29, 0
      %p50 = por %p48, %p49
      %p51 = scmp.ne.s32.totalorder %s37, %s38
      %p52 = scmp.eq.s32.totalorder %s30, 1
      %p53 = por %p51, %p52
      %p55 = scmp.ne.s32.totalorder %s38, %s54
      %p56 = scmp.eq.s32.totalorder %s30, 0
      %p57 = por %p55, %p56
      %s58 = ssub.s32 %s24, %s31
      %p59 = scmp.eq.s32.totalorder %s58, 0
      %s61 = sadd.s32 %s60, 1
      %s62 = scalar_select %p59, %s60, %s61
      %p65 = pneg %p59
      %p66 = scmp.eq.s32.totalorder %s24, 1
      %p67 = por %p65, %p66
      %p68 = scmp.ne.s32.totalorder %s60, %s63
      %p69 = scmp.eq.s32.totalorder %s24, 0
      %p70 = por %p68, %p69
      %p71 = scmp.ne.s32.totalorder %s60, %s63
      %p72 = scmp.eq.s32.totalorder %s29, 1
      %p73 = por %p71, %p72
      %p74 = scmp.ne.s32.totalorder %s63, %s64
      %p75 = scmp.eq.s32.totalorder %s29, 0
      %p76 = por %p74, %p75
      %p77 = scmp.ne.s32.totalorder %s63, %s64
      %p78 = scmp.eq.s32.totalorder %s30, 1
      %p79 = por %p77, %p78
      %p81 = scmp.ne.s32.totalorder %s64, %s80
      %p82 = scmp.eq.s32.totalorder %s30, 0
      %p83 = por %p81, %p82
      %s84 = ssub.s32 %s24, %s31
      %p85 = scmp.eq.s32.totalorder %s84, 0
      %s87 = sadd.s32 %s86, 1
      %s88 = scalar_select %p85, %s86, %s87
      %p91 = pneg %p85
      %p92 = scmp.eq.s32.totalorder %s24, 1
      %p93 = por %p91, %p92
      %p94 = scmp.ne.s32.totalorder %s86, %s89
      %p95 = scmp.eq.s32.totalorder %s24, 0
      %p96 = por %p94, %p95
      %p97 = scmp.ne.s32.totalorder %s86, %s89
      %p98 = scmp.eq.s32.totalorder %s29, 1
      %p99 = por %p97, %p98
      %p100 = scmp.ne.s32.totalorder %s89, %s90
      %p101 = scmp.eq.s32.totalorder %s29, 0
      %p102 = por %p100, %p101
      %p103 = scmp.ne.s32.totalorder %s89, %s90
      %p104 = scmp.eq.s32.totalorder %s30, 1
      %p105 = por %p103, %p104
      %p107 = scmp.ne.s32.totalorder %s90, %s106
      %p108 = scmp.eq.s32.totalorder %s30, 0
      %p109 = por %p107, %p108
      %s111 = sadd.s32 %s110, 1
      %p114 = scmp.eq.s32.totalorder %s24, 1
      %p115 = scmp.ne.s32.totalorder %s110, %s112
      %p116 = scmp.eq.s32.totalorder %s24, 0
      %p117 = por %p115, %p116
      %p118 = scmp.ne.s32.totalorder %s110, %s112
      %p119 = scmp.eq.s32.totalorder %s29, 1
      %p120 = por %p118, %p119
      %p121 = scmp.ne.s32.totalorder %s112, %s113
      %p122 = scmp.eq.s32.totalorder %s29, 0
      %p123 = por %p121, %p122
      %p124 = scmp.ne.s32.totalorder %s112, %s113
      %p125 = scmp.eq.s32.totalorder %s30, 1
      %p126 = por %p124, %p125
      %p128 = scmp.ne.s32.totalorder %s113, %s127
      %p129 = scmp.eq.s32.totalorder %s30, 0
      %p130 = por %p128, %p129
      %s132 = sadd.s32 %s131, 1
      %p135 = scmp.eq.s32.totalorder %s24, 1
      %p136 = scmp.ne.s32.totalorder %s131, %s133
      %p137 = scmp.eq.s32.totalorder %s24, 0
      %p138 = por %p136, %p137
      %p139 = scmp.ne.s32.totalorder %s131, %s133
      %p140 = scmp.eq.s32.totalorder %s29, 1
      %p141 = por %p139, %p140
      %p142 = scmp.ne.s32.totalorder %s133, %s134
      %p143 = scmp.eq.s32.totalorder %s29, 0
      %p144 = por %p142, %p143
      %p145 = scmp.ne.s32.totalorder %s133, %s134
      %p146 = scmp.eq.s32.totalorder %s30, 1
      %p147 = por %p145, %p146
      %p149 = scmp.ne.s32.totalorder %s134, %s148
      %p150 = scmp.eq.s32.totalorder %s30, 0
      %p151 = por %p149, %p150
      %s153 = sadd.s32 %s152, 1
      %p156 = scmp.eq.s32.totalorder %s24, 1
      %p157 = scmp.ne.s32.totalorder %s152, %s154
      %p158 = scmp.eq.s32.totalorder %s24, 0
      %p159 = por %p157, %p158
      %p160 = scmp.ne.s32.totalorder %s152, %s154
      %p161 = scmp.eq.s32.totalorder %s29, 1
      %p162 = por %p160, %p161
      %p163 = scmp.ne.s32.totalorder %s154, %s155
      %p164 = scmp.eq.s32.totalorder %s29, 0
      %p165 = por %p163, %p164
      %p166 = scmp.ne.s32.totalorder %s154, %s155
      %p167 = scmp.eq.s32.totalorder %s30, 1
      %p168 = por %p166, %p167
      %p170 = scmp.ne.s32.totalorder %s155, %s169
      %p171 = scmp.eq.s32.totalorder %s30, 0
      %p172 = por %p170, %p171
      %s174 = sadd.s32 %s173, 1
      %p177 = scmp.eq.s32.totalorder %s24, 1
      %p178 = scmp.ne.s32.totalorder %s173, %s175
      %p179 = scmp.eq.s32.totalorder %s24, 0
      %p180 = por %p178, %p179
      %p181 = scmp.ne.s32.totalorder %s173, %s175
      %p182 = scmp.eq.s32.totalorder %s29, 1
      %p183 = por %p181, %p182
      %p184 = scmp.ne.s32.totalorder %s175, %s176
      %p185 = scmp.eq.s32.totalorder %s29, 0
      %p186 = por %p184, %p185
      %p187 = scmp.ne.s32.totalorder %s175, %s176
      %p188 = scmp.eq.s32.totalorder %s30, 1
      %p189 = por %p187, %p188
      %p191 = scmp.ne.s32.totalorder %s176, %s190
      %p192 = scmp.eq.s32.totalorder %s30, 0
      %p193 = por %p191, %p192
      %s194 = ssub.s32 %s24, %s31
      %p195 = scmp.eq.s32.totalorder %s194, 0
      %s197 = sadd.s32 %s196, 1
      %s198 = scalar_select %p195, %s196, %s197
      %p201 = pneg %p195
      %p202 = scmp.eq.s32.totalorder %s24, 1
      %p203 = por %p201, %p202
      %p204 = scmp.ne.s32.totalorder %s196, %s199
      %p205 = scmp.eq.s32.totalorder %s24, 0
      %p206 = por %p204, %p205
      %p207 = scmp.ne.s32.totalorder %s196, %s199
      %p208 = scmp.eq.s32.totalorder %s29, 1
      %p209 = por %p207, %p208
      %p210 = scmp.ne.s32.totalorder %s199, %s200
      %p211 = scmp.eq.s32.totalorder %s29, 0
      %p212 = por %p210, %p211
      %p213 = scmp.ne.s32.totalorder %s199, %s200
      %p214 = scmp.eq.s32.totalorder %s30, 1
      %p215 = por %p213, %p214
      %p217 = scmp.ne.s32.totalorder %s200, %s216
      %p218 = scmp.eq.s32.totalorder %s30, 0
      %p219 = por %p217, %p218
      %p220 = scmp.le.s32.totalorder 1, %s24
      %p221 = scmp.lt.s32.totalorder %s24, 3
      %p222 = pnand %p220, %p221
      %p223 = pneg %p222
      // Predicated region
      $region9: #{tpu_custom_call.1} parent=5 // pred_check
        _
      $region10: #{tpu_custom_call.1} parent=5 // pred_check_branch
        %225 = sbr.rel (%p222) target = $region12
      $region11: #{tpu_custom_call.1} parent=5 // pred_region
        %s226 = ssub.s32 %s24, 1
        // Predicated region
        $region13: #{tpu_custom_call.1} parent=11 // pred_check
          %p227 = pneg %p123
        $region14: #{tpu_custom_call.1} parent=11 // pred_check_branch
          %229 = sbr.rel (%p227) target = $region16
        $region15: #{tpu_custom_call.1} parent=11 // pred_region
          _
        $region16: #{tpu_custom_call.1} parent=11 // pred_fallthru
          _
        // Predicated region
        $region17: #{tpu_custom_call.1} parent=11 // pred_check
          %p230 = pneg %p144
        $region18: #{tpu_custom_call.1} parent=11 // pred_check_branch
          %232 = sbr.rel (%p230) target = $region20
        $region19: #{tpu_custom_call.1} parent=11 // pred_region
          _
        $region20: #{tpu_custom_call.1} parent=11 // pred_fallthru
          _
        // Predicated region
        $region21: #{tpu_custom_call.1} parent=11 // pred_check
          %p233 = pneg %p165
        $region22: #{tpu_custom_call.1} parent=11 // pred_check_branch
          %235 = sbr.rel (%p233) target = $region24
        $region23: #{tpu_custom_call.1} parent=11 // pred_region
          _
        $region24: #{tpu_custom_call.1} parent=11 // pred_fallthru
          _
        // Predicated region
        $region25: #{tpu_custom_call.1} parent=11 // pred_check
          %p236 = pneg %p186
        $region26: #{tpu_custom_call.1} parent=11 // pred_check_branch
          %238 = sbr.rel (%p236) target = $region28
        $region27: #{tpu_custom_call.1} parent=11 // pred_region
          _
        $region28: #{tpu_custom_call.1} parent=11 // pred_fallthru
          _
      $region12: #{tpu_custom_call.1} parent=5 // pred_fallthru
        _
      %p239 = scmp.lt.s32.totalorder %s24, 2
      // Predicated region
      $region29: #{tpu_custom_call.1} parent=5 // pred_check
        %p240 = pneg %p239
      $region30: #{tpu_custom_call.1} parent=5 // pred_check_branch
        %242 = sbr.rel (%p240) target = $region32
      $region31: #{tpu_custom_call.1} parent=5 // pred_region
        // Predicated region
        $region33: #{tpu_custom_call.1} parent=31 // pred_check
          %p243 = pneg %p44
        $region34: #{tpu_custom_call.1} parent=31 // pred_check_branch
          %245 = sbr.rel (%p243) target = $region36
        $region35: #{tpu_custom_call.1} parent=31 // pred_region
          %s246 = sand.u32 %s34, 1
          %s247 = scalar_lea.sflag [#allocation4], %s246
          %s248 = sand.u32 %s34, 1
          %s249 = smul.addr %s248, 128
          %s250 = scalar_lea.vmem [#allocation3], %s249
          %s251 = smul.u32 4, %s24
          %s253 = ssub.s32 2048, 2048
          %254 = vsyncadd %s247, %s253
          %s255 = smul.addr %s251, 128
          %s256 = scalar_lea.hbm %s0, %s255
          %s257 = sshll.u32 %s250, 4
          %s258 = int_to_ptr.vmem [resolvable:$true] %s257
          %263 = dma.hbm_to_vmem [thread:$0]  %s256, 2048, %s258, %s247, 1024, 512, 32
        $region36: #{tpu_custom_call.1} parent=31 // pred_fallthru
          _
        // Predicated region
        $region37: #{tpu_custom_call.1} parent=31 // pred_check
          %p264 = pneg %p70
        $region38: #{tpu_custom_call.1} parent=31 // pred_check_branch
          %266 = sbr.rel (%p264) target = $region40
        $region39: #{tpu_custom_call.1} parent=31 // pred_region
          %s267 = sand.u32 %s24, 1
          %s268 = scalar_lea.sflag [#allocation7], %s267
          %s269 = sand.u32 %s60, 1
          %s270 = smul.addr %s269, 64
          %s271 = scalar_lea.vmem [#allocation6], %s270
          %s272 = smul.u32 4, %s24
          %s274 = ssub.s32 1024, 1024
          %275 = vsyncadd %s268, %s274
          %s276 = smul.addr %s272, 128
          %s277 = scalar_lea.hbm %s1, %s276
          %s278 = sshll.u32 %s271, 4
          %s279 = int_to_ptr.vmem [resolvable:$true] %s278
          %284 = dma.hbm_to_vmem [thread:$0]  %s277, 1024, %s279, %s268, 1024, 512, 32
        $region40: #{tpu_custom_call.1} parent=31 // pred_fallthru
          _
        // Predicated region
        $region41: #{tpu_custom_call.1} parent=31 // pred_check
          %p285 = pneg %p96
        $region42: #{tpu_custom_call.1} parent=31 // pred_check_branch
          %287 = sbr.rel (%p285) target = $region44
        $region43: #{tpu_custom_call.1} parent=31 // pred_region
          %s288 = sand.u32 %s24, 1
          %s289 = scalar_lea.sflag [#allocation7], %s288
          %s290 = sand.u32 %s86, 1
          %s291 = smul.addr %s290, 32
          %s292 = scalar_lea.vmem [#allocation8], %s291
          %s293 = smul.u32 4, %s24
          %s295 = ssub.s32 512, 512
          %296 = vsyncadd %s289, %s295
          %s297 = smul.addr %s293, 128
          %s298 = scalar_lea.hbm %s2, %s297
          %s300 = sshll.u32 %s292, 4
          %s301 = int_to_ptr.vmem [resolvable:$true] %s300
          %303 = dma.hbm_to_vmem [thread:$0]  %s298, 512, %s301, %s289
        $region44: #{tpu_custom_call.1} parent=31 // pred_fallthru
          _
      $region32: #{tpu_custom_call.1} parent=5 // pred_fallthru
        _
      %p304 = scmp.le.s32.totalorder 1, %s24
      %p305 = scmp.lt.s32.totalorder %s24, 3
      %p306 = pnand %p304, %p305
      %p307 = pneg %p306
      // Predicated region
      $region45: #{tpu_custom_call.1} parent=5 // pred_check
        _
      $region46: #{tpu_custom_call.1} parent=5 // pred_check_branch
        %309 = sbr.rel (%p306) target = $region48
      $region47: #{tpu_custom_call.1} parent=5 // pred_region
        %s310 = ssub.s32 %s24, 1
        %s311 = sand.u32 %s37, 1
        %s312 = scalar_lea.sflag [#allocation4], %s311
        %s313 = sand.u32 %s37, 1
        %s314 = smul.addr %s313, 128
        %s315 = scalar_lea.vmem [#allocation3], %s314
        // Predicated region
        $region49: #{tpu_custom_call.1} parent=47 // pred_check
          %p316 = pneg %p50
        $region50: #{tpu_custom_call.1} parent=47 // pred_check_branch
          %318 = sbr.rel (%p316) target = $region52
        $region51: #{tpu_custom_call.1} parent=47 // pred_region
          %319 = dma.done %s312, 2048
        $region52: #{tpu_custom_call.1} parent=47 // pred_fallthru
          _
        %s320 = sand.u32 %s29, 1
        %s321 = scalar_lea.sflag [#allocation7], %s320
        %s322 = sand.u32 %s63, 1
        %s323 = smul.addr %s322, 64
        %s324 = scalar_lea.vmem [#allocation6], %s323
        // Predicated region
        $region53: #{tpu_custom_call.1} parent=47 // pred_check
          %p325 = pneg %p76
        $region54: #{tpu_custom_call.1} parent=47 // pred_check_branch
          %327 = sbr.rel (%p325) target = $region56
        $region55: #{tpu_custom_call.1} parent=47 // pred_region
          %328 = dma.done %s321, 1024
        $region56: #{tpu_custom_call.1} parent=47 // pred_fallthru
          _
        %s329 = sand.u32 %s29, 1
        %s330 = scalar_lea.sflag [#allocation7], %s329
        %s331 = sand.u32 %s89, 1
        %s332 = smul.addr %s331, 32
        %s333 = scalar_lea.vmem [#allocation8], %s332
        // Predicated region
        $region57: #{tpu_custom_call.1} parent=47 // pred_check
          %p334 = pneg %p102
        $region58: #{tpu_custom_call.1} parent=47 // pred_check_branch
          %336 = sbr.rel (%p334) target = $region60
        $region59: #{tpu_custom_call.1} parent=47 // pred_region
          %337 = dma.done %s330, 512
        $region60: #{tpu_custom_call.1} parent=47 // pred_fallthru
          _
        %s338 = sand.u32 %s37, 1
        %s339 = scalar_lea.sflag [#allocation4], %s338
        %s340 = sand.u32 %s37, 1
        %s341 = smul.addr %s340, 128
        %s342 = scalar_lea.vmem [#allocation3], %s341
        %p343 = pneg %p50
        %p344 = pneg %p47
        %s345 = sand.u32 %s29, 1
        %s346 = scalar_lea.sflag [#allocation7], %s345
        %s347 = sand.u32 %s63, 1
        %s348 = smul.addr %s347, 64
        %s349 = scalar_lea.vmem [#allocation6], %s348
        %p350 = pneg %p76
        %p351 = pneg %p73
        %s352 = sand.u32 %s29, 1
        %s353 = scalar_lea.sflag [#allocation7], %s352
        %s354 = sand.u32 %s89, 1
        %s355 = smul.addr %s354, 32
        %s356 = scalar_lea.vmem [#allocation8], %s355
        %p357 = pneg %p102
        %p358 = pneg %p99
        %p359 = pneg %p123
        %p360 = pneg %p120
        %p361 = pneg %p144
        %p362 = pneg %p141
        %p363 = pneg %p165
        %p364 = pneg %p162
        %p365 = pneg %p186
        %p366 = pneg %p183
        %p367 = pneg %p212
        %p368 = pneg %p209
        %s369 = sand.u32 %s199, 1
        %s370 = scalar_lea.sflag [#allocation5], %s369
        %s371 = sand.u32 %s199, 1
        %s372 = smul.addr %s371, 4
        %s373 = scalar_lea.vmem [#allocation9], %s372
        %s374 = smul.u32 4, %s29
        %s375 = smul.u32 4, %s29
        %s376 = smul.u32 4, %s29
        %s377 = smul.u32 4, %s29
        %v378 = vld [vmem:[%s3] sm:$0x1]
        %v379 = vld [vmem:[%s315] sm:$0xff]
        %v380 = vld [vmem:[%s315 + $0x8] sm:$0xff]
        %v381 = vld [vmem:[%s315 + $0x10] sm:$0xff]
        %v382 = vld [vmem:[%s315 + $0x18] sm:$0xff]
        %v383 = vld [vmem:[%s315 + $0x20] sm:$0xff]
        %v384 = vld [vmem:[%s315 + $0x28] sm:$0xff]
        %v385 = vld [vmem:[%s315 + $0x30] sm:$0xff]
        %v386 = vld [vmem:[%s315 + $0x38] sm:$0xff]
        %v387 = vld [vmem:[%s315 + $0x40] sm:$0xff]
        %v388 = vld [vmem:[%s315 + $0x48] sm:$0xff]
        %v389 = vld [vmem:[%s315 + $0x50] sm:$0xff]
        %v390 = vld [vmem:[%s315 + $0x58] sm:$0xff]
        %v391 = vld [vmem:[%s315 + $0x60] sm:$0xff]
        %v392 = vld [vmem:[%s315 + $0x68] sm:$0xff]
        %v393 = vld [vmem:[%s315 + $0x70] sm:$0xff]
        %v394 = vld [vmem:[%s315 + $0x78] sm:$0xff]
        %v395 = vld [vmem:[%s4] sm:$0x1]
        %v396 = vld [vmem:[%s324] sm:$0xff]
        %v397 = vld [vmem:[%s324 + $0x8] sm:$0xff]
        %v398 = vld [vmem:[%s324 + $0x10] sm:$0xff]
        %v399 = vld [vmem:[%s324 + $0x18] sm:$0xff]
        %v400 = vld [vmem:[%s324 + $0x20] sm:$0xff]
        %v401 = vld [vmem:[%s324 + $0x28] sm:$0xff]
        %v402 = vld [vmem:[%s324 + $0x30] sm:$0xff]
        %v403 = vld [vmem:[%s324 + $0x38] sm:$0xff]
        %vm404 = vcmask 130048
        %v406 = vsel %vm404, %v395, 0
        %408 = vmatprep.subr.mxu0 %v397
        %409 = vmatpush1.msra.mxu0 %v396
        %410 = vmatprep.subr.mxu0 %v401
        %411 = vmatpush1.msra.mxu0 %v400
        %412 = vmatprep.subr.mxu0 0.0
        %413 = vmatpush1.msra.mxu0 0.0
        %414 = vmatprep.subr.mxu0 0.0
        %415 = vmatpush1.msra.mxu0 0.0
        %416 = vmatprep.subr.mxu0 0.0
        %417 = vmatpush1.msra.mxu0 0.0
        %418 = vmatprep.subr.mxu0 0.0
        %419 = vmatpush1.msra.mxu0 0.0
        %420 = vmatprep.subr.mxu0 0.0
        %421 = vmatpush1.msra.mxu0 0.0
        %422 = vmatprep.subr.mxu0 0.0
        %423 = vmatpush1.msra.mxu0 0.0
        %424 = vmatprep.subr.mxu0 0.0
        %425 = vmatpush1.msra.mxu0 0.0
        %426 = vmatprep.subr.mxu0 0.0
        %427 = vmatpush1.msra.mxu0 0.0
        %428 = vmatprep.subr.mxu0 0.0
        %429 = vmatpush1.msra.mxu0 0.0
        %430 = vmatprep.subr.mxu0 0.0
        %431 = vmatpush1.msra.mxu0 0.0
        %432 = vmatprep.subr.mxu0 0.0
        %433 = vmatpush1.msra.mxu0 0.0
        %434 = vmatprep.subr.mxu0 0.0
        %435 = vmatpush1.msra.mxu0 0.0
        %436 = vmatprep.subr.mxu0 0.0
        %437 = vmatpush1.msra.mxu0 0.0
        %438 = vmatprep.subr.mxu0 0.0
        %439 = vmatpush1.msra.mxu0 0.0
        %440 = vmatprep.subr.mxu0 0.0
        %441 = vmatpush1.msra.mxu0 0.0
        %442 = vmatprep.subr.mxu0 0.0
        %443 = vmatpush1.msra.mxu0 0.0
        %444 = vmatprep.subr.mxu0 0.0
        %445 = vmatpush1.msra.mxu0 0.0
        %446 = vmatprep.subr.mxu0 0.0
        %447 = vmatpush1.msra.mxu0 0.0
        %448 = vmatprep.subr.mxu0 0.0
        %449 = vmatpush1.msra.mxu0 0.0
        %450 = vmatprep.subr.mxu0 0.0
        %451 = vmatpush1.msra.mxu0 0.0
        %452 = vmatprep.subr.mxu0 0.0
        %453 = vmatpush1.msra.mxu0 0.0
        %454 = vmatprep.subr.mxu0 0.0
        %455 = vmatpush1.msra.mxu0 0.0
        %456 = vmatprep.subr.mxu0 0.0
        %457 = vmatpush1.msra.mxu0 0.0
        %458 = vmatprep.subr.mxu0 0.0
        %459 = vmatpush1.msra.mxu0 0.0
        %460 = vmatprep.subr.mxu0 0.0
        %461 = vmatpush1.msra.mxu0 0.0
        %462 = vmatprep.subr.mxu0 0.0
        %463 = vmatpush1.msra.mxu0 0.0
        %464 = vmatprep.subr.mxu0 0.0
        %465 = vmatpush1.msra.mxu0 0.0
        %466 = vmatprep.subr.mxu0 0.0
        %467 = vmatpush1.msra.mxu0 0.0
        %468 = vmatprep.subr.mxu0 0.0
        %469 = vmatpush1.msra.mxu0 0.0
        %470 = vmatprep.subr.mxu0 0.0
        %471 = vmatpush1.msra.mxu0 0.0
        %472 = vmatprep.mubr.f32.mxu0 0.0
        %473 = vmatmul.mubr.f32.gmra.mrb[0].mxu0 %v406
        %v474 = vpop.f32.mrb[0].mxu0
        %v475 = vadd.f32 0.0, %v474
        %v476 = vpop.f32.mrb[0].mxu0
        %v477 = vadd.f32 0.0, %v476
        %478 = vdwg.mxu0
        %479 = vmatprep.subr.mxu0 %v399
        %480 = vmatpush1.msra.mxu0 %v398
        %481 = vmatprep.subr.mxu0 %v403
        %482 = vmatpush1.msra.mxu0 %v402
        %483 = vmatprep.subr.mxu0 0.0
        %484 = vmatpush1.msra.mxu0 0.0
        %485 = vmatprep.subr.mxu0 0.0
        %486 = vmatpush1.msra.mxu0 0.0
        %487 = vmatprep.subr.mxu0 0.0
        %488 = vmatpush1.msra.mxu0 0.0
        %489 = vmatprep.subr.mxu0 0.0
        %490 = vmatpush1.msra.mxu0 0.0
        %491 = vmatprep.subr.mxu0 0.0
        %492 = vmatpush1.msra.mxu0 0.0
        %493 = vmatprep.subr.mxu0 0.0
        %494 = vmatpush1.msra.mxu0 0.0
        %495 = vmatprep.subr.mxu0 0.0
        %496 = vmatpush1.msra.mxu0 0.0
        %497 = vmatprep.subr.mxu0 0.0
        %498 = vmatpush1.msra.mxu0 0.0
        %499 = vmatprep.subr.mxu0 0.0
        %500 = vmatpush1.msra.mxu0 0.0
        %501 = vmatprep.subr.mxu0 0.0
        %502 = vmatpush1.msra.mxu0 0.0
        %503 = vmatprep.subr.mxu0 0.0
        %504 = vmatpush1.msra.mxu0 0.0
        %505 = vmatprep.subr.mxu0 0.0
        %506 = vmatpush1.msra.mxu0 0.0
        %507 = vmatprep.subr.mxu0 0.0
        %508 = vmatpush1.msra.mxu0 0.0
        %509 = vmatprep.subr.mxu0 0.0
        %510 = vmatpush1.msra.mxu0 0.0
        %511 = vmatprep.subr.mxu0 0.0
        %512 = vmatpush1.msra.mxu0 0.0
        %513 = vmatprep.subr.mxu0 0.0
        %514 = vmatpush1.msra.mxu0 0.0
        %515 = vmatprep.subr.mxu0 0.0
        %516 = vmatpush1.msra.mxu0 0.0
        %517 = vmatprep.subr.mxu0 0.0
        %518 = vmatpush1.msra.mxu0 0.0
        %519 = vmatprep.subr.mxu0 0.0
        %520 = vmatpush1.msra.mxu0 0.0
        %521 = vmatprep.subr.mxu0 0.0
        %522 = vmatpush1.msra.mxu0 0.0
        %523 = vmatprep.subr.mxu0 0.0
        %524 = vmatpush1.msra.mxu0 0.0
        %525 = vmatprep.subr.mxu0 0.0
        %526 = vmatpush1.msra.mxu0 0.0
        %527 = vmatprep.subr.mxu0 0.0
        %528 = vmatpush1.msra.mxu0 0.0
        %529 = vmatprep.subr.mxu0 0.0
        %530 = vmatpush1.msra.mxu0 0.0
        %531 = vmatprep.subr.mxu0 0.0
        %532 = vmatpush1.msra.mxu0 0.0
        %533 = vmatprep.subr.mxu0 0.0
        %534 = vmatpush1.msra.mxu0 0.0
        %535 = vmatprep.subr.mxu0 0.0
        %536 = vmatpush1.msra.mxu0 0.0
        %537 = vmatprep.subr.mxu0 0.0
        %538 = vmatpush1.msra.mxu0 0.0
        %539 = vmatprep.subr.mxu0 0.0
        %540 = vmatpush1.msra.mxu0 0.0
        %541 = vmatprep.subr.mxu0 0.0
        %542 = vmatpush1.msra.mxu0 0.0
        %543 = vmatprep.mubr.f32.mxu0 0.0
        %544 = vmatmul.mubr.f32.gmra.mrb[0].mxu0 %v406
        %v545 = vpop.f32.mrb[0].mxu0
        %v546 = vadd.f32 0.0, %v545
        %v547 = vpop.f32.mrb[0].mxu0
        %v548 = vadd.f32 0.0, %v547
        %549 = vdwg.mxu0
        %vm550 = vcmask 261120
        %v552 = vsel %vm550, %v378, 0
        %554 = vmatprep.subr.mxu0 %v380
        %555 = vmatpush1.msra.mxu0 %v379
        %556 = vmatprep.subr.mxu0 %v384
        %557 = vmatpush1.msra.mxu0 %v383
        %558 = vmatprep.subr.mxu0 %v388
        %559 = vmatpush1.msra.mxu0 %v387
        %560 = vmatprep.subr.mxu0 %v392
        %561 = vmatpush1.msra.mxu0 %v391
        %562 = vmatprep.subr.mxu0 0.0
        %563 = vmatpush1.msra.mxu0 0.0
        %564 = vmatprep.subr.mxu0 0.0
        %565 = vmatpush1.msra.mxu0 0.0
        %566 = vmatprep.subr.mxu0 0.0
        %567 = vmatpush1.msra.mxu0 0.0
        %568 = vmatprep.subr.mxu0 0.0
        %569 = vmatpush1.msra.mxu0 0.0
        %570 = vmatprep.subr.mxu0 0.0
        %571 = vmatpush1.msra.mxu0 0.0
        %572 = vmatprep.subr.mxu0 0.0
        %573 = vmatpush1.msra.mxu0 0.0
        %574 = vmatprep.subr.mxu0 0.0
        %575 = vmatpush1.msra.mxu0 0.0
        %576 = vmatprep.subr.mxu0 0.0
        %577 = vmatpush1.msra.mxu0 0.0
        %578 = vmatprep.subr.mxu0 0.0
        %579 = vmatpush1.msra.mxu0 0.0
        %580 = vmatprep.subr.mxu0 0.0
        %581 = vmatpush1.msra.mxu0 0.0
        %582 = vmatprep.subr.mxu0 0.0
        %583 = vmatpush1.msra.mxu0 0.0
        %584 = vmatprep.subr.mxu0 0.0
        %585 = vmatpush1.msra.mxu0 0.0
        %586 = vmatprep.subr.mxu0 0.0
        %587 = vmatpush1.msra.mxu0 0.0
        %588 = vmatprep.subr.mxu0 0.0
        %589 = vmatpush1.msra.mxu0 0.0
        %590 = vmatprep.subr.mxu0 0.0
        %591 = vmatpush1.msra.mxu0 0.0
        %592 = vmatprep.subr.mxu0 0.0
        %593 = vmatpush1.msra.mxu0 0.0
        %594 = vmatprep.subr.mxu0 0.0
        %595 = vmatpush1.msra.mxu0 0.0
        %596 = vmatprep.subr.mxu0 0.0
        %597 = vmatpush1.msra.mxu0 0.0
        %598 = vmatprep.subr.mxu0 0.0
        %599 = vmatpush1.msra.mxu0 0.0
        %600 = vmatprep.subr.mxu0 0.0
        %601 = vmatpush1.msra.mxu0 0.0
        %602 = vmatprep.subr.mxu0 0.0
        %603 = vmatpush1.msra.mxu0 0.0
        %604 = vmatprep.subr.mxu0 0.0
        %605 = vmatpush1.msra.mxu0 0.0
        %606 = vmatprep.subr.mxu0 0.0
        %607 = vmatpush1.msra.mxu0 0.0
        %608 = vmatprep.subr.mxu0 0.0
        %609 = vmatpush1.msra.mxu0 0.0
        %610 = vmatprep.subr.mxu0 0.0
        %611 = vmatpush1.msra.mxu0 0.0
        %612 = vmatprep.subr.mxu0 0.0
        %613 = vmatpush1.msra.mxu0 0.0
        %614 = vmatprep.subr.mxu0 0.0
        %615 = vmatpush1.msra.mxu0 0.0
        %616 = vmatprep.subr.mxu0 0.0
        %617 = vmatpush1.msra.mxu0 0.0
        %618 = vmatprep.mubr.f32.mxu0 0.0
        %619 = vmatmul.mubr.f32.gmra.mrb[0].mxu0 %v552
        %v620 = vpop.f32.mrb[0].mxu0
        %v621 = vadd.f32 %v475, %v620
        %v622 = vpop.f32.mrb[0].mxu0
        %v623 = vadd.f32 %v477, %v622
        %624 = vdwg.mxu0
        %625 = vmatprep.subr.mxu0 %v382
        %626 = vmatpush1.msra.mxu0 %v381
        %627 = vmatprep.subr.mxu0 %v386
        %628 = vmatpush1.msra.mxu0 %v385
        %629 = vmatprep.subr.mxu0 %v390
        %630 = vmatpush1.msra.mxu0 %v389
        %631 = vmatprep.subr.mxu0 %v394
        %632 = vmatpush1.msra.mxu0 %v393
        %633 = vmatprep.subr.mxu0 0.0
        %634 = vmatpush1.msra.mxu0 0.0
        %635 = vmatprep.subr.mxu0 0.0
        %636 = vmatpush1.msra.mxu0 0.0
        %637 = vmatprep.subr.mxu0 0.0
        %638 = vmatpush1.msra.mxu0 0.0
        %639 = vmatprep.subr.mxu0 0.0
        %640 = vmatpush1.msra.mxu0 0.0
        %641 = vmatprep.subr.mxu0 0.0
        %642 = vmatpush1.msra.mxu0 0.0
        %643 = vmatprep.subr.mxu0 0.0
        %644 = vmatpush1.msra.mxu0 0.0
        %645 = vmatprep.subr.mxu0 0.0
        %646 = vmatpush1.msra.mxu0 0.0
        %647 = vmatprep.subr.mxu0 0.0
        %648 = vmatpush1.msra.mxu0 0.0
        %649 = vmatprep.subr.mxu0 0.0
        %650 = vmatpush1.msra.mxu0 0.0
        %651 = vmatprep.subr.mxu0 0.0
        %652 = vmatpush1.msra.mxu0 0.0
        %653 = vmatprep.subr.mxu0 0.0
        %654 = vmatpush1.msra.mxu0 0.0
        %655 = vmatprep.subr.mxu0 0.0
        %656 = vmatpush1.msra.mxu0 0.0
        %657 = vmatprep.subr.mxu0 0.0
        %658 = vmatpush1.msra.mxu0 0.0
        %659 = vmatprep.subr.mxu0 0.0
        %660 = vmatpush1.msra.mxu0 0.0
        %661 = vmatprep.subr.mxu0 0.0
        %662 = vmatpush1.msra.mxu0 0.0
        %663 = vmatprep.subr.mxu0 0.0
        %664 = vmatpush1.msra.mxu0 0.0
        %665 = vmatprep.subr.mxu0 0.0
        %666 = vmatpush1.msra.mxu0 0.0
        %667 = vmatprep.subr.mxu0 0.0
        %668 = vmatpush1.msra.mxu0 0.0
        %669 = vmatprep.subr.mxu0 0.0
        %670 = vmatpush1.msra.mxu0 0.0
        %671 = vmatprep.subr.mxu0 0.0
        %672 = vmatpush1.msra.mxu0 0.0
        %673 = vmatprep.subr.mxu0 0.0
        %674 = vmatpush1.msra.mxu0 0.0
        %675 = vmatprep.subr.mxu0 0.0
        %676 = vmatpush1.msra.mxu0 0.0
        %677 = vmatprep.subr.mxu0 0.0
        %678 = vmatpush1.msra.mxu0 0.0
        %679 = vmatprep.subr.mxu0 0.0
        %680 = vmatpush1.msra.mxu0 0.0
        %681 = vmatprep.subr.mxu0 0.0
        %682 = vmatpush1.msra.mxu0 0.0
        %683 = vmatprep.subr.mxu0 0.0
        %684 = vmatpush1.msra.mxu0 0.0
        %685 = vmatprep.subr.mxu0 0.0
        %686 = vmatpush1.msra.mxu0 0.0
        %687 = vmatprep.subr.mxu0 0.0
        %688 = vmatpush1.msra.mxu0 0.0
        %689 = vmatprep.mubr.f32.mxu0 0.0
        %690 = vmatmul.mubr.f32.gmra.mrb[0].mxu0 %v552
        %v691 = vpop.f32.mrb[0].mxu0
        %v692 = vadd.f32 %v546, %v691
        %v693 = vpop.f32.mrb[0].mxu0
        %v694 = vadd.f32 %v548, %v693
        %695 = vdwg.mxu0
        %v696 = vld [vmem:[%s5] sm:$0x1]
        %v697 = vld [vmem:[%s333] sm:$0xff]
        %v698 = vld [vmem:[%s333 + $0x8] sm:$0xff]
        %v699 = vld [vmem:[%s333 + $0x10] sm:$0xff]
        %v700 = vld [vmem:[%s333 + $0x18] sm:$0xff]
        %vm701 = vcmask 64512
        %v703 = vsel %vm701, %v696, 0
        %705 = vmatprep.subr.mxu0 %v698
        %706 = vmatpush1.msra.mxu0 %v697
        %707 = vmatprep.subr.mxu0 0.0
        %708 = vmatpush1.msra.mxu0 0.0
        %709 = vmatprep.subr.mxu0 0.0
        %710 = vmatpush1.msra.mxu0 0.0
        %711 = vmatprep.subr.mxu0 0.0
        %712 = vmatpush1.msra.mxu0 0.0
        %713 = vmatprep.subr.mxu0 0.0
        %714 = vmatpush1.msra.mxu0 0.0
        %715 = vmatprep.subr.mxu0 0.0
        %716 = vmatpush1.msra.mxu0 0.0
        %717 = vmatprep.subr.mxu0 0.0
        %718 = vmatpush1.msra.mxu0 0.0
        %719 = vmatprep.subr.mxu0 0.0
        %720 = vmatpush1.msra.mxu0 0.0
        %721 = vmatprep.subr.mxu0 0.0
        %722 = vmatpush1.msra.mxu0 0.0
        %723 = vmatprep.subr.mxu0 0.0
        %724 = vmatpush1.msra.mxu0 0.0
        %725 = vmatprep.subr.mxu0 0.0
        %726 = vmatpush1.msra.mxu0 0.0
        %727 = vmatprep.subr.mxu0 0.0
        %728 = vmatpush1.msra.mxu0 0.0
        %729 = vmatprep.subr.mxu0 0.0
        %730 = vmatpush1.msra.mxu0 0.0
        %731 = vmatprep.subr.mxu0 0.0
        %732 = vmatpush1.msra.mxu0 0.0
        %733 = vmatprep.subr.mxu0 0.0
        %734 = vmatpush1.msra.mxu0 0.0
        %735 = vmatprep.subr.mxu0 0.0
        %736 = vmatpush1.msra.mxu0 0.0
        %737 = vmatprep.subr.mxu0 0.0
        %738 = vmatpush1.msra.mxu0 0.0
        %739 = vmatprep.subr.mxu0 0.0
        %740 = vmatpush1.msra.mxu0 0.0
        %741 = vmatprep.subr.mxu0 0.0
        %742 = vmatpush1.msra.mxu0 0.0
        %743 = vmatprep.subr.mxu0 0.0
        %744 = vmatpush1.msra.mxu0 0.0
        %745 = vmatprep.subr.mxu0 0.0
        %746 = vmatpush1.msra.mxu0 0.0
        %747 = vmatprep.subr.mxu0 0.0
        %748 = vmatpush1.msra.mxu0 0.0
        %749 = vmatprep.subr.mxu0 0.0
        %750 = vmatpush1.msra.mxu0 0.0
        %751 = vmatprep.subr.mxu0 0.0
        %752 = vmatpush1.msra.mxu0 0.0
        %753 = vmatprep.subr.mxu0 0.0
        %754 = vmatpush1.msra.mxu0 0.0
        %755 = vmatprep.subr.mxu0 0.0
        %756 = vmatpush1.msra.mxu0 0.0
        %757 = vmatprep.subr.mxu0 0.0
        %758 = vmatpush1.msra.mxu0 0.0
        %759 = vmatprep.subr.mxu0 0.0
        %760 = vmatpush1.msra.mxu0 0.0
        %761 = vmatprep.subr.mxu0 0.0
        %762 = vmatpush1.msra.mxu0 0.0
        %763 = vmatprep.subr.mxu0 0.0
        %764 = vmatpush1.msra.mxu0 0.0
        %765 = vmatprep.subr.mxu0 0.0
        %766 = vmatpush1.msra.mxu0 0.0
        %767 = vmatprep.subr.mxu0 0.0
        %768 = vmatpush1.msra.mxu0 0.0
        %769 = vmatprep.mubr.f32.mxu0 0.0
        %770 = vmatmul.mubr.f32.gmra.mrb[0].mxu0 %v703
        %v771 = vpop.f32.mrb[0].mxu0
        %v772 = vadd.f32 0.0, %v771
        %v773 = vpop.f32.mrb[0].mxu0
        %v774 = vadd.f32 0.0, %v773
        %775 = vdwg.mxu0
        %776 = vmatprep.subr.mxu0 %v700
        %777 = vmatpush1.msra.mxu0 %v699
        %778 = vmatprep.subr.mxu0 0.0
        %779 = vmatpush1.msra.mxu0 0.0
        %780 = vmatprep.subr.mxu0 0.0
        %781 = vmatpush1.msra.mxu0 0.0
        %782 = vmatprep.subr.mxu0 0.0
        %783 = vmatpush1.msra.mxu0 0.0
        %784 = vmatprep.subr.mxu0 0.0
        %785 = vmatpush1.msra.mxu0 0.0
        %786 = vmatprep.subr.mxu0 0.0
        %787 = vmatpush1.msra.mxu0 0.0
        %788 = vmatprep.subr.mxu0 0.0
        %789 = vmatpush1.msra.mxu0 0.0
        %790 = vmatprep.subr.mxu0 0.0
        %791 = vmatpush1.msra.mxu0 0.0
        %792 = vmatprep.subr.mxu0 0.0
        %793 = vmatpush1.msra.mxu0 0.0
        %794 = vmatprep.subr.mxu0 0.0
        %795 = vmatpush1.msra.mxu0 0.0
        %796 = vmatprep.subr.mxu0 0.0
        %797 = vmatpush1.msra.mxu0 0.0
        %798 = vmatprep.subr.mxu0 0.0
        %799 = vmatpush1.msra.mxu0 0.0
        %800 = vmatprep.subr.mxu0 0.0
        %801 = vmatpush1.msra.mxu0 0.0
        %802 = vmatprep.subr.mxu0 0.0
        %803 = vmatpush1.msra.mxu0 0.0
        %804 = vmatprep.subr.mxu0 0.0
        %805 = vmatpush1.msra.mxu0 0.0
        %806 = vmatprep.subr.mxu0 0.0
        %807 = vmatpush1.msra.mxu0 0.0
        %808 = vmatprep.subr.mxu0 0.0
        %809 = vmatpush1.msra.mxu0 0.0
        %810 = vmatprep.subr.mxu0 0.0
        %811 = vmatpush1.msra.mxu0 0.0
        %812 = vmatprep.subr.mxu0 0.0
        %813 = vmatpush1.msra.mxu0 0.0
        %814 = vmatprep.subr.mxu0 0.0
        %815 = vmatpush1.msra.mxu0 0.0
        %816 = vmatprep.subr.mxu0 0.0
        %817 = vmatpush1.msra.mxu0 0.0
        %818 = vmatprep.subr.mxu0 0.0
        %819 = vmatpush1.msra.mxu0 0.0
        %820 = vmatprep.subr.mxu0 0.0
        %821 = vmatpush1.msra.mxu0 0.0
        %822 = vmatprep.subr.mxu0 0.0
        %823 = vmatpush1.msra.mxu0 0.0
        %824 = vmatprep.subr.mxu0 0.0
        %825 = vmatpush1.msra.mxu0 0.0
        %826 = vmatprep.subr.mxu0 0.0
        %827 = vmatpush1.msra.mxu0 0.0
        %828 = vmatprep.subr.mxu0 0.0
        %829 = vmatpush1.msra.mxu0 0.0
        %830 = vmatprep.subr.mxu0 0.0
        %831 = vmatpush1.msra.mxu0 0.0
        %832 = vmatprep.subr.mxu0 0.0
        %833 = vmatpush1.msra.mxu0 0.0
        %834 = vmatprep.subr.mxu0 0.0
        %835 = vmatpush1.msra.mxu0 0.0
        %836 = vmatprep.subr.mxu0 0.0
        %837 = vmatpush1.msra.mxu0 0.0
        %838 = vmatprep.subr.mxu0 0.0
        %839 = vmatpush1.msra.mxu0 0.0
        %840 = vmatprep.mubr.f32.mxu0 0.0
        %841 = vmatmul.mubr.f32.gmra.mrb[0].mxu0 %v703
        %v842 = vpop.f32.mrb[0].mxu0
        %v843 = vadd.f32 0.0, %v842
        %v844 = vpop.f32.mrb[0].mxu0
        %v845 = vadd.f32 0.0, %v844
        %846 = vdwg.mxu0
        %v847 = vadd.f32 %v621, %v772
        %v848 = vadd.f32 %v623, %v774
        %v849 = vadd.f32 %v692, %v843
        %v850 = vadd.f32 %v694, %v845
        %v851 = vld [vmem:[#allocation2] sm:$0x1]
        %853 = vset.pattern.permute.xlu0 0
        %854 = vperm.xlu0 %853, %v851
        %v855 = vpop.permute.xlu0 %854
        %v857 = vlaneseq
        %v858 = vshrl.u32 %v857, 7
        %v859 = vsub.s32 0, %v858
        %v860 = vrot.slane %v855, %v859
        %v861 = vadd.f32 %v847, %v860
        %v862 = vadd.f32 %v848, %v860
        %v863 = vadd.f32 %v849, %v860
        %v864 = vadd.f32 %v850, %v860
        %v869 = vcombine.low %v861, %v862
        %v870 = vcombine.low %v863, %v864
        %v872 = vunpack.c.l.s4 1966171168
        %v873 = vunpack.c.0.s8 %v872
        %v874 = vlaneseq
        %v875 = vshrl.u32 %v874, 7
        %v876 = vsub.s32 %v873, %v875
        %v877 = vrot.slane %v869, %v876
        %v879 = vunpack.c.l.s4 1966171168
        %v880 = vunpack.c.0.s8 %v879
        %v881 = vlaneseq
        %v882 = vshrl.u32 %v881, 7
        %v883 = vsub.s32 %v880, %v882
        %v884 = vrot.slane %v870, %v883
        %v885 = vcombine.low %v877, %v884
        %v887 = vunpack.c.l.s4 1966171168
        %v888 = vunpack.c.0.s8 %v887
        %v889 = vlaneseq
        %v890 = vshrl.u32 %v889, 7
        %v891 = vsub.s32 %v888, %v890
        %v892 = vrot.slane %v885, %v891
        %v894 = vlaneseq
        %vm895 = vcmp.ge.s32.totalorder %v894, 0
        %vm896 = vcmp.lt.s32.totalorder %v894, 512
        %vm897 = vmand %vm895, %vm896
        %898 = vst.msk [vmem:[%s373] sm:$0xf] %vm897, %v892
        %s899 = sand.u32 %s199, 1
        %s900 = scalar_lea.sflag [#allocation5], %s899
        %s901 = sand.u32 %s199, 1
        %s902 = smul.addr %s901, 4
        %s903 = scalar_lea.vmem [#allocation9], %s902
        // Predicated region
        $region61: #{tpu_custom_call.1} parent=47 // pred_check
          %p904 = pneg %p209
        $region62: #{tpu_custom_call.1} parent=47 // pred_check_branch
          %906 = sbr.rel (%p904) target = $region64
        $region63: #{tpu_custom_call.1} parent=47 // pred_region
          %s907 = smul.u32 4, %s29
          %s909 = ssub.s32 64, 64
          %910 = vsyncadd %s900, %s909
          %s911 = smul.addr %s907, 16
          %s912 = scalar_lea.hbm %s7, %s911
          %s914 = sshll.u32 %s903, 4
          %s915 = int_to_ptr.vmem [resolvable:$true] %s914
          %917 = dma.vmem_to_hbm [thread:$0]  %s915, 64, %s912, %s900
        $region64: #{tpu_custom_call.1} parent=47 // pred_fallthru
          _
      $region48: #{tpu_custom_call.1} parent=5 // pred_fallthru
        _
      %p918 = scmp.le.s32.totalorder 2, %s24
      // Predicated region
      $region65: #{tpu_custom_call.1} parent=5 // pred_check
        %p919 = pneg %p918
      $region66: #{tpu_custom_call.1} parent=5 // pred_check_branch
        %921 = sbr.rel (%p919) target = $region68
      $region67: #{tpu_custom_call.1} parent=5 // pred_region
        %s922 = ssub.s32 %s24, 2
        // Predicated region
        $region69: #{tpu_custom_call.1} parent=67 // pred_check
          %p923 = pneg %p215
        $region70: #{tpu_custom_call.1} parent=67 // pred_check_branch
          %925 = sbr.rel (%p923) target = $region72
        $region71: #{tpu_custom_call.1} parent=67 // pred_region
          %s926 = sand.u32 %s200, 1
          %s927 = scalar_lea.sflag [#allocation5], %s926
          %s928 = sand.u32 %s200, 1
          %s929 = smul.addr %s928, 4
          %s930 = scalar_lea.vmem [#allocation9], %s929
          %931 = dma.done %s927, 64
        $region72: #{tpu_custom_call.1} parent=67 // pred_fallthru
          _
      $region68: #{tpu_custom_call.1} parent=5 // pred_fallthru
        _
    $region6: #{tpu_custom_call.1} parent=1 // loop_footer
      %s28 = sadd.s32 1, %s24
    $region7: #{tpu_custom_call.1} parent=1 // loop_footer_branch
      %23 = sbr.rel target = $region3
    $region8: #{tpu_custom_call.1} parent=1 // loop_exit
      _
    %932 = vsyncpa [#allocation4], 1
    %s933 = scalar_lea.sflag [#allocation4], 1
    %934 = vsyncpa %s933, 1
    %935 = vsyncpa [#allocation7], 1
    %s936 = scalar_lea.sflag [#allocation7], 1
    %937 = vsyncpa %s936, 1
    %938 = vsyncpa [#allocation5], 1
    %s939 = scalar_lea.sflag [#allocation5], 1
    %940 = vsyncpa %s939, 1

// kernel: tpu_custom_call.1
$region0: #{tpu_custom_call.1}
  #allocation0 [shape = 'u32[]', space=smem, size = 0x4, offset = 0x4, fixed_abs, tag = 'smem constant byte address 0x4 - core index']
  #allocation1 [shape = 'u32[144,128]{1,0:T(1,128)}', space=vmem, size = 0x12000, scoped, tag = 'internal scratch']
  #allocation2 [shape = 'f32[1,1]{1,0:T(1,128)S(1)}', space=vmem, size = 0x200, scoped, tag = 'scoped memory for tpu_custom_call.1']
  %s0 = inlined_call_operand.hbm [shape: f32[32,1000], index: 0, kind: input, shape index: {}]
  %s1 = inlined_call_operand.hbm [shape: f32[16,1000], index: 1, kind: input, shape index: {}]
  %s2 = inlined_call_operand.hbm [shape: f32[8,1000], index: 2, kind: input, shape index: {}]
  %s3 = inlined_call_operand.vmem [shape: f32[1,32], index: 3, kind: input, shape index: {}]
  %s4 = inlined_call_operand.vmem [shape: f32[1,16], index: 4, kind: input, shape index: {}]
  %s5 = inlined_call_operand.vmem [shape: f32[1,8], index: 5, kind: input, shape index: {}]
  %s6 = inlined_call_operand.<no memory space> [shape: f32[1,1], index: 6, kind: input, shape index: {}]
  %s7 = inlined_call_operand.hbm [shape: f32[1,1000], index: 7, kind: output, shape index: {}]
  %s8 = sld [smem:[#allocation0]]
  $region73: #{tpu_custom_call.1} parent=0
    _
  %s10 = ssub.s32 1, %s8
  %s11 = scalar_select 0, %s10, %s8
  %v12 = vstv %s6
  %13 = vst [vmem:[#allocation2] sm:$0x1] %v12
  $region1: #{tpu_custom_call.1} parent=0
    #allocation3 [shape = 'u8[131072]{0}', space=vmem, size = 0x20000, scoped, tag = 'input window, operand 0']
    #allocation4 [shape = 's32[2]{0}', space=sflag, size = 0x8, scoped, tag = 'scoped memory for tpu_custom_call.1']
    #allocation5 [shape = 's32[2]{0}', space=sflag, size = 0x8, scoped, tag = 'scoped memory for tpu_custom_call.1']
    #allocation6 [shape = 'u8[65536]{0}', space=vmem, size = 0x10000, scoped, tag = 'input window, operand 1']
    #allocation7 [shape = 's32[2]{0}', space=sflag, size = 0x8, scoped, tag = 'scoped memory for tpu_custom_call.1']
    #allocation8 [shape = 'u8[32768]{0}', space=vmem, size = 0x8000, scoped, tag = 'input window, operand 2']
    #allocation9 [shape = 'u8[4096]{0}', space=vmem, size = 0x1000, scoped, tag = 'output window, operand 0']
    %14 = vsyncpa [#allocation4], 0
    %s15 = scalar_lea.sflag [#allocation4], 1
    %16 = vsyncpa %s15, 0
    %17 = vsyncpa [#allocation7], 0
    %s18 = scalar_lea.sflag [#allocation7], 1
    %19 = vsyncpa %s18, 0
    %20 = vsyncpa [#allocation5], 0
    %s21 = scalar_lea.sflag [#allocation5], 1
    %22 = vsyncpa %s21, 0
    loop: start=0, step=1, limit=4
    $region2: #{tpu_custom_call.1} parent=1 // loop_pre_header
      _
    $region3: #{tpu_custom_call.1} parent=1 // loop_header
      %s24 = sphi 0, %s28
      %p25 = scmp.ge.s32.totalorder %s24, 4
      %s34 = sphi 0, %s36
      %s37 = sphi 0, %s34
      %s38 = sphi 0, %s37
      %s54 = sphi 0, %s38
      %s60 = sphi 0, %s62
      %s63 = sphi 0, %s60
      %s64 = sphi 0, %s63
      %s80 = sphi 0, %s64
      %s86 = sphi 0, %s88
      %s89 = sphi 0, %s86
      %s90 = sphi 0, %s89
      %s106 = sphi 0, %s90
      %s110 = sphi 0, %s110
      %s112 = sphi 0, %s110
      %s113 = sphi 0, %s112
      %s127 = sphi 0, %s113
      %s131 = sphi 0, %s131
      %s133 = sphi 0, %s131
      %s134 = sphi 0, %s133
      %s148 = sphi 0, %s134
      %s152 = sphi 0, %s152
      %s154 = sphi 0, %s152
      %s155 = sphi 0, %s154
      %s169 = sphi 0, %s155
      %s173 = sphi 0, %s173
      %s175 = sphi 0, %s173
      %s176 = sphi 0, %s175
      %s190 = sphi 0, %s176
      %s196 = sphi 0, %s198
      %s199 = sphi 0, %s196
      %s200 = sphi 0, %s199
      %s216 = sphi 0, %s200
    $region4: #{tpu_custom_call.1} parent=1 // loop_header_branch
      %27 = sbr.rel (%p25) target = $region8
    $region5: #{tpu_custom_call.1} parent=1 // loop_body
      %s29 = ssub.s32 %s24, 1
      %s30 = ssub.s32 %s24, 2
      %s31 = sadd.s32 %s24, 1
      %s32 = ssub.s32 %s24, %s31
      %p33 = scmp.eq.s32.totalorder %s32, 0
      %s35 = sadd.s32 %s34, 1
      %s36 = scalar_select %p33, %s34, %s35
      %p39 = pneg %p33
      %p40 = scmp.eq.s32.totalorder %s24, 1
      %p41 = por %p39, %p40
      %p42 = scmp.ne.s32.totalorder %s34, %s37
      %p43 = scmp.eq.s32.totalorder %s24, 0
      %p44 = por %p42, %p43
      %p45 = scmp.ne.s32.totalorder %s34, %s37
      %p46 = scmp.eq.s32.totalorder %s29, 1
      %p47 = por %p45, %p46
      %p48 = scmp.ne.s32.totalorder %s37, %s38
      %p49 = scmp.eq.s32.totalorder %s29, 0
      %p50 = por %p48, %p49
      %p51 = scmp.ne.s32.totalorder %s37, %s38
      %p52 = scmp.eq.s32.totalorder %s30, 1
      %p53 = por %p51, %p52
      %p55 = scmp.ne.s32.totalorder %s38, %s54
      %p56 = scmp.eq.s32.totalorder %s30, 0
      %p57 = por %p55, %p56
      %s58 = ssub.s32 %s24, %s31
      %p59 = scmp.eq.s32.totalorder %s58, 0
      %s61 = sadd.s32 %s60, 1
      %s62 = scalar_select %p59, %s60, %s61
      %p65 = pneg %p59
      %p66 = scmp.eq.s32.totalorder %s24, 1
      %p67 = por %p65, %p66
      %p68 = scmp.ne.s32.totalorder %s60, %s63
      %p69 = scmp.eq.s32.totalorder %s24, 0
      %p70 = por %p68, %p69
      %p71 = scmp.ne.s32.totalorder %s60, %s63
      %p72 = scmp.eq.s32.totalorder %s29, 1
      %p73 = por %p71, %p72
      %p74 = scmp.ne.s32.totalorder %s63, %s64
      %p75 = scmp.eq.s32.totalorder %s29, 0
      %p76 = por %p74, %p75
      %p77 = scmp.ne.s32.totalorder %s63, %s64
      %p78 = scmp.eq.s32.totalorder %s30, 1
      %p79 = por %p77, %p78
      %p81 = scmp.ne.s32.totalorder %s64, %s80
      %p82 = scmp.eq.s32.totalorder %s30, 0
      %p83 = por %p81, %p82
      %s84 = ssub.s32 %s24, %s31
      %p85 = scmp.eq.s32.totalorder %s84, 0
      %s87 = sadd.s32 %s86, 1
      %s88 = scalar_select %p85, %s86, %s87
      %p91 = pneg %p85
      %p92 = scmp.eq.s32.totalorder %s24, 1
      %p93 = por %p91, %p92
      %p94 = scmp.ne.s32.totalorder %s86, %s89
      %p95 = scmp.eq.s32.totalorder %s24, 0
      %p96 = por %p94, %p95
      %p97 = scmp.ne.s32.totalorder %s86, %s89
      %p98 = scmp.eq.s32.totalorder %s29, 1
      %p99 = por %p97, %p98
      %p100 = scmp.ne.s32.totalorder %s89, %s90
      %p101 = scmp.eq.s32.totalorder %s29, 0
      %p102 = por %p100, %p101
      %p103 = scmp.ne.s32.totalorder %s89, %s90
      %p104 = scmp.eq.s32.totalorder %s30, 1
      %p105 = por %p103, %p104
      %p107 = scmp.ne.s32.totalorder %s90, %s106
      %p108 = scmp.eq.s32.totalorder %s30, 0
      %p109 = por %p107, %p108
      %s111 = sadd.s32 %s110, 1
      %p114 = scmp.eq.s32.totalorder %s24, 1
      %p115 = scmp.ne.s32.totalorder %s110, %s112
      %p116 = scmp.eq.s32.totalorder %s24, 0
      %p117 = por %p115, %p116
      %p118 = scmp.ne.s32.totalorder %s110, %s112
      %p119 = scmp.eq.s32.totalorder %s29, 1
      %p120 = por %p118, %p119
      %p121 = scmp.ne.s32.totalorder %s112, %s113
      %p122 = scmp.eq.s32.totalorder %s29, 0
      %p123 = por %p121, %p122
      %p124 = scmp.ne.s32.totalorder %s112, %s113
      %p125 = scmp.eq.s32.totalorder %s30, 1
      %p126 = por %p124, %p125
      %p128 = scmp.ne.s32.totalorder %s113, %s127
      %p129 = scmp.eq.s32.totalorder %s30, 0
      %p130 = por %p128, %p129
      %s132 = sadd.s32 %s131, 1
      %p135 = scmp.eq.s32.totalorder %s24, 1
      %p136 = scmp.ne.s32.totalorder %s131, %s133
      %p137 = scmp.eq.s32.totalorder %s24, 0
      %p138 = por %p136, %p137
      %p139 = scmp.ne.s32.totalorder %s131, %s133
      %p140 = scmp.eq.s32.totalorder %s29, 1
      %p141 = por %p139, %p140
      %p142 = scmp.ne.s32.totalorder %s133, %s134
      %p143 = scmp.eq.s32.totalorder %s29, 0
      %p144 = por %p142, %p143
      %p145 = scmp.ne.s32.totalorder %s133, %s134
      %p146 = scmp.eq.s32.totalorder %s30, 1
      %p147 = por %p145, %p146
      %p149 = scmp.ne.s32.totalorder %s134, %s148
      %p150 = scmp.eq.s32.totalorder %s30, 0
      %p151 = por %p149, %p150
      %s153 = sadd.s32 %s152, 1
      %p156 = scmp.eq.s32.totalorder %s24, 1
      %p157 = scmp.ne.s32.totalorder %s152, %s154
      %p158 = scmp.eq.s32.totalorder %s24, 0
      %p159 = por %p157, %p158
      %p160 = scmp.ne.s32.totalorder %s152, %s154
      %p161 = scmp.eq.s32.totalorder %s29, 1
      %p162 = por %p160, %p161
      %p163 = scmp.ne.s32.totalorder %s154, %s155
      %p164 = scmp.eq.s32.totalorder %s29, 0
      %p165 = por %p163, %p164
      %p166 = scmp.ne.s32.totalorder %s154, %s155
      %p167 = scmp.eq.s32.totalorder %s30, 1
      %p168 = por %p166, %p167
      %p170 = scmp.ne.s32.totalorder %s155, %s169
      %p171 = scmp.eq.s32.totalorder %s30, 0
      %p172 = por %p170, %p171
      %s174 = sadd.s32 %s173, 1
      %p177 = scmp.eq.s32.totalorder %s24, 1
      %p178 = scmp.ne.s32.totalorder %s173, %s175
      %p179 = scmp.eq.s32.totalorder %s24, 0
      %p180 = por %p178, %p179
      %p181 = scmp.ne.s32.totalorder %s173, %s175
      %p182 = scmp.eq.s32.totalorder %s29, 1
      %p183 = por %p181, %p182
      %p184 = scmp.ne.s32.totalorder %s175, %s176
      %p185 = scmp.eq.s32.totalorder %s29, 0
      %p186 = por %p184, %p185
      %p187 = scmp.ne.s32.totalorder %s175, %s176
      %p188 = scmp.eq.s32.totalorder %s30, 1
      %p189 = por %p187, %p188
      %p191 = scmp.ne.s32.totalorder %s176, %s190
      %p192 = scmp.eq.s32.totalorder %s30, 0
      %p193 = por %p191, %p192
      %s194 = ssub.s32 %s24, %s31
      %p195 = scmp.eq.s32.totalorder %s194, 0
      %s197 = sadd.s32 %s196, 1
      %s198 = scalar_select %p195, %s196, %s197
      %p201 = pneg %p195
      %p202 = scmp.eq.s32.totalorder %s24, 1
      %p203 = por %p201, %p202
      %p204 = scmp.ne.s32.totalorder %s196, %s199
      %p205 = scmp.eq.s32.totalorder %s24, 0
      %p206 = por %p204, %p205
      %p207 = scmp.ne.s32.totalorder %s196, %s199
      %p208 = scmp.eq.s32.totalorder %s29, 1
      %p209 = por %p207, %p208
      %p210 = scmp.ne.s32.totalorder %s199, %s200
      %p211 = scmp.eq.s32.totalorder %s29, 0
      %p212 = por %p210, %p211
      %p213 = scmp.ne.s32.totalorder %s199, %s200
      %p214 = scmp.eq.s32.totalorder %s30, 1
      %p215 = por %p213, %p214
      %p217 = scmp.ne.s32.totalorder %s200, %s216
      %p218 = scmp.eq.s32.totalorder %s30, 0
      %p219 = por %p217, %p218
      %p220 = scmp.le.s32.totalorder 1, %s24
      %p221 = scmp.lt.s32.totalorder %s24, 3
      %p222 = pnand %p220, %p221
      %p223 = pneg %p222
      // Predicated region
      $region9: #{tpu_custom_call.1} parent=5 // pred_check
        _
      $region10: #{tpu_custom_call.1} parent=5 // pred_check_branch
        %225 = sbr.rel (%p222) target = $region12
      $region11: #{tpu_custom_call.1} parent=5 // pred_region
        %s226 = ssub.s32 %s24, 1
        // Predicated region
        $region13: #{tpu_custom_call.1} parent=11 // pred_check
          %p227 = pneg %p123
        $region14: #{tpu_custom_call.1} parent=11 // pred_check_branch
          %229 = sbr.rel (%p227) target = $region16
        $region15: #{tpu_custom_call.1} parent=11 // pred_region
          _
        $region16: #{tpu_custom_call.1} parent=11 // pred_fallthru
          _
        // Predicated region
        $region17: #{tpu_custom_call.1} parent=11 // pred_check
          %p230 = pneg %p144
        $region18: #{tpu_custom_call.1} parent=11 // pred_check_branch
          %232 = sbr.rel (%p230) target = $region20
        $region19: #{tpu_custom_call.1} parent=11 // pred_region
          _
        $region20: #{tpu_custom_call.1} parent=11 // pred_fallthru
          _
        // Predicated region
        $region21: #{tpu_custom_call.1} parent=11 // pred_check
          %p233 = pneg %p165
        $region22: #{tpu_custom_call.1} parent=11 // pred_check_branch
          %235 = sbr.rel (%p233) target = $region24
        $region23: #{tpu_custom_call.1} parent=11 // pred_region
          _
        $region24: #{tpu_custom_call.1} parent=11 // pred_fallthru
          _
        // Predicated region
        $region25: #{tpu_custom_call.1} parent=11 // pred_check
          %p236 = pneg %p186
        $region26: #{tpu_custom_call.1} parent=11 // pred_check_branch
          %238 = sbr.rel (%p236) target = $region28
        $region27: #{tpu_custom_call.1} parent=11 // pred_region
          _
        $region28: #{tpu_custom_call.1} parent=11 // pred_fallthru
          _
      $region12: #{tpu_custom_call.1} parent=5 // pred_fallthru
        _
      %p239 = scmp.lt.s32.totalorder %s24, 2
      // Predicated region
      $region29: #{tpu_custom_call.1} parent=5 // pred_check
        %p240 = pneg %p239
      $region30: #{tpu_custom_call.1} parent=5 // pred_check_branch
        %242 = sbr.rel (%p240) target = $region32
      $region31: #{tpu_custom_call.1} parent=5 // pred_region
        // Predicated region
        $region33: #{tpu_custom_call.1} parent=31 // pred_check
          %p243 = pneg %p44
        $region34: #{tpu_custom_call.1} parent=31 // pred_check_branch
          %245 = sbr.rel (%p243) target = $region36
        $region35: #{tpu_custom_call.1} parent=31 // pred_region
          %s246 = sand.u32 %s34, 1
          %s247 = scalar_lea.sflag [#allocation4], %s246
          %s248 = sand.u32 %s34, 1
          %s249 = smul.addr %s248, 128
          %s250 = scalar_lea.vmem [#allocation3], %s249
          %s251 = smul.u32 4, %s24
          %s253 = ssub.s32 2048, 2048
          %254 = vsyncadd %s247, %s253
          %s255 = smul.addr %s251, 128
          %s256 = scalar_lea.hbm %s0, %s255
          %s257 = sshll.u32 %s250, 4
          %s258 = int_to_ptr.vmem [resolvable:$true] %s257
          %263 = dma.hbm_to_vmem [thread:$0]  %s256, 2048, %s258, %s247, 1024, 512, 32
        $region36: #{tpu_custom_call.1} parent=31 // pred_fallthru
          _
        // Predicated region
        $region37: #{tpu_custom_call.1} parent=31 // pred_check
          %p264 = pneg %p70
        $region38: #{tpu_custom_call.1} parent=31 // pred_check_branch
          %266 = sbr.rel (%p264) target = $region40
        $region39: #{tpu_custom_call.1} parent=31 // pred_region
          %s267 = sand.u32 %s24, 1
          %s268 = scalar_lea.sflag [#allocation7], %s267
          %s269 = sand.u32 %s60, 1
          %s270 = smul.addr %s269, 64
          %s271 = scalar_lea.vmem [#allocation6], %s270
          %s272 = smul.u32 4, %s24
          %s274 = ssub.s32 1024, 1024
          %275 = vsyncadd %s268, %s274
          %s276 = smul.addr %s272, 128
          %s277 = scalar_lea.hbm %s1, %s276
          %s278 = sshll.u32 %s271, 4
          %s279 = int_to_ptr.vmem [resolvable:$true] %s278
          %284 = dma.hbm_to_vmem [thread:$0]  %s277, 1024, %s279, %s268, 1024, 512, 32
        $region40: #{tpu_custom_call.1} parent=31 // pred_fallthru
          _
        // Predicated region
        $region41: #{tpu_custom_call.1} parent=31 // pred_check
          %p285 = pneg %p96
        $region42: #{tpu_custom_call.1} parent=31 // pred_check_branch
          %287 = sbr.rel (%p285) target = $region44
        $region43: #{tpu_custom_call.1} parent=31 // pred_region
          %s288 = sand.u32 %s24, 1
          %s289 = scalar_lea.sflag [#allocation7], %s288
          %s290 = sand.u32 %s86, 1
          %s291 = smul.addr %s290, 32
          %s292 = scalar_lea.vmem [#allocation8], %s291
          %s293 = smul.u32 4, %s24
          %s295 = ssub.s32 512, 512
          %296 = vsyncadd %s289, %s295
          %s297 = smul.addr %s293, 128
          %s298 = scalar_lea.hbm %s2, %s297
          %s300 = sshll.u32 %s292, 4
          %s301 = int_to_ptr.vmem [resolvable:$true] %s300
          %303 = dma.hbm_to_vmem [thread:$0]  %s298, 512, %s301, %s289
        $region44: #{tpu_custom_call.1} parent=31 // pred_fallthru
          _
      $region32: #{tpu_custom_call.1} parent=5 // pred_fallthru
        _
      %p304 = scmp.le.s32.totalorder 1, %s24
      %p305 = scmp.lt.s32.totalorder %s24, 3
      %p306 = pnand %p304, %p305
      %p307 = pneg %p306
      // Predicated region
      $region45: #{tpu_custom_call.1} parent=5 // pred_check
        _
      $region46: #{tpu_custom_call.1} parent=5 // pred_check_branch
        %309 = sbr.rel (%p306) target = $region48
      $region47: #{tpu_custom_call.1} parent=5 // pred_region
        %s310 = ssub.s32 %s24, 1
        %s311 = sand.u32 %s37, 1
        %s312 = scalar_lea.sflag [#allocation4], %s311
        %s313 = sand.u32 %s37, 1
        %s314 = smul.addr %s313, 128
        %s315 = scalar_lea.vmem [#allocation3], %s314
        // Predicated region
        $region49: #{tpu_custom_call.1} parent=47 // pred_check
          %p316 = pneg %p50
        $region50: #{tpu_custom_call.1} parent=47 // pred_check_branch
          %318 = sbr.rel (%p316) target = $region52
        $region51: #{tpu_custom_call.1} parent=47 // pred_region
          %319 = dma.done %s312, 2048
        $region52: #{tpu_custom_call.1} parent=47 // pred_fallthru
          _
        %s320 = sand.u32 %s29, 1
        %s321 = scalar_lea.sflag [#allocation7], %s320
        %s322 = sand.u32 %s63, 1
        %s323 = smul.addr %s322, 64
        %s324 = scalar_lea.vmem [#allocation6], %s323
        // Predicated region
        $region53: #{tpu_custom_call.1} parent=47 // pred_check
          %p325 = pneg %p76
        $region54: #{tpu_custom_call.1} parent=47 // pred_check_branch
          %327 = sbr.rel (%p325) target = $region56
        $region55: #{tpu_custom_call.1} parent=47 // pred_region
          %328 = dma.done %s321, 1024
        $region56: #{tpu_custom_call.1} parent=47 // pred_fallthru
          _
        %s329 = sand.u32 %s29, 1
        %s330 = scalar_lea.sflag [#allocation7], %s329
        %s331 = sand.u32 %s89, 1
        %s332 = smul.addr %s331, 32
        %s333 = scalar_lea.vmem [#allocation8], %s332
        // Predicated region
        $region57: #{tpu_custom_call.1} parent=47 // pred_check
          %p334 = pneg %p102
        $region58: #{tpu_custom_call.1} parent=47 // pred_check_branch
          %336 = sbr.rel (%p334) target = $region60
        $region59: #{tpu_custom_call.1} parent=47 // pred_region
          %337 = dma.done %s330, 512
        $region60: #{tpu_custom_call.1} parent=47 // pred_fallthru
          _
        %s338 = sand.u32 %s37, 1
        %s339 = scalar_lea.sflag [#allocation4], %s338
        %s340 = sand.u32 %s37, 1
        %s341 = smul.addr %s340, 128
        %s342 = scalar_lea.vmem [#allocation3], %s341
        %p343 = pneg %p50
        %p344 = pneg %p47
        %s345 = sand.u32 %s29, 1
        %s346 = scalar_lea.sflag [#allocation7], %s345
        %s347 = sand.u32 %s63, 1
        %s348 = smul.addr %s347, 64
        %s349 = scalar_lea.vmem [#allocation6], %s348
        %p350 = pneg %p76
        %p351 = pneg %p73
        %s352 = sand.u32 %s29, 1
        %s353 = scalar_lea.sflag [#allocation7], %s352
        %s354 = sand.u32 %s89, 1
        %s355 = smul.addr %s354, 32
        %s356 = scalar_lea.vmem [#allocation8], %s355
        %p357 = pneg %p102
        %p358 = pneg %p99
        %p359 = pneg %p123
        %p360 = pneg %p120
        %p361 = pneg %p144
        %p362 = pneg %p141
        %p363 = pneg %p165
        %p364 = pneg %p162
        %p365 = pneg %p186
        %p366 = pneg %p183
        %p367 = pneg %p212
        %p368 = pneg %p209
        %s369 = sand.u32 %s199, 1
        %s370 = scalar_lea.sflag [#allocation5], %s369
        %s371 = sand.u32 %s199, 1
        %s372 = smul.addr %s371, 4
        %s373 = scalar_lea.vmem [#allocation9], %s372
        %s374 = smul.u32 4, %s29
        %s375 = smul.u32 4, %s29
        %s376 = smul.u32 4, %s29
        %s377 = smul.u32 4, %s29
        %v378 = vld [vmem:[%s3] sm:$0x1]
        %v379 = vld [vmem:[%s315] sm:$0xff]
        %v380 = vld [vmem:[%s315 + $0x8] sm:$0xff]
        %v381 = vld [vmem:[%s315 + $0x10] sm:$0xff]
        %v382 = vld [vmem:[%s315 + $0x18] sm:$0xff]
        %v383 = vld [vmem:[%s315 + $0x20] sm:$0xff]
        %v384 = vld [vmem:[%s315 + $0x28] sm:$0xff]
        %v385 = vld [vmem:[%s315 + $0x30] sm:$0xff]
        %v386 = vld [vmem:[%s315 + $0x38] sm:$0xff]
        %v387 = vld [vmem:[%s315 + $0x40] sm:$0xff]
        %v388 = vld [vmem:[%s315 + $0x48] sm:$0xff]
        %v389 = vld [vmem:[%s315 + $0x50] sm:$0xff]
        %v390 = vld [vmem:[%s315 + $0x58] sm:$0xff]
        %v391 = vld [vmem:[%s315 + $0x60] sm:$0xff]
        %v392 = vld [vmem:[%s315 + $0x68] sm:$0xff]
        %v393 = vld [vmem:[%s315 + $0x70] sm:$0xff]
        %v394 = vld [vmem:[%s315 + $0x78] sm:$0xff]
        %v395 = vld [vmem:[%s4] sm:$0x1]
        %v396 = vld [vmem:[%s324] sm:$0xff]
        %v397 = vld [vmem:[%s324 + $0x8] sm:$0xff]
        %v398 = vld [vmem:[%s324 + $0x10] sm:$0xff]
        %v399 = vld [vmem:[%s324 + $0x18] sm:$0xff]
        %v400 = vld [vmem:[%s324 + $0x20] sm:$0xff]
        %v401 = vld [vmem:[%s324 + $0x28] sm:$0xff]
        %v402 = vld [vmem:[%s324 + $0x30] sm:$0xff]
        %v403 = vld [vmem:[%s324 + $0x38] sm:$0xff]
        %vm404 = vcmask 130048
        %v406 = vsel %vm404, %v395, 0
        %408 = vmatprep.subr.mxu0 %v397
        %409 = vmatpush1.msra.mxu0 %v396
        %410 = vmatprep.subr.mxu0 %v401
        %411 = vmatpush1.msra.mxu0 %v400
        %412 = vmatprep.subr.mxu0 0.0
        %413 = vmatpush1.msra.mxu0 0.0
        %414 = vmatprep.subr.mxu0 0.0
        %415 = vmatpush1.msra.mxu0 0.0
        %416 = vmatprep.subr.mxu0 0.0
        %417 = vmatpush1.msra.mxu0 0.0
        %418 = vmatprep.subr.mxu0 0.0
        %419 = vmatpush1.msra.mxu0 0.0
        %420 = vmatprep.subr.mxu0 0.0
        %421 = vmatpush1.msra.mxu0 0.0
        %422 = vmatprep.subr.mxu0 0.0
        %423 = vmatpush1.msra.mxu0 0.0
        %424 = vmatprep.subr.mxu0 0.0
        %425 = vmatpush1.msra.mxu0 0.0
        %426 = vmatprep.subr.mxu0 0.0
        %427 = vmatpush1.msra.mxu0 0.0
        %428 = vmatprep.subr.mxu0 0.0
        %429 = vmatpush1.msra.mxu0 0.0
        %430 = vmatprep.subr.mxu0 0.0
        %431 = vmatpush1.msra.mxu0 0.0
        %432 = vmatprep.subr.mxu0 0.0
        %433 = vmatpush1.msra.mxu0 0.0
        %434 = vmatprep.subr.mxu0 0.0
        %435 = vmatpush1.msra.mxu0 0.0
        %436 = vmatprep.subr.mxu0 0.0
        %437 = vmatpush1.msra.mxu0 0.0
        %438 = vmatprep.subr.mxu0 0.0
        %439 = vmatpush1.msra.mxu0 0.0
        %440 = vmatprep.subr.mxu0 0.0
        %441 = vmatpush1.msra.mxu0 0.0
        %442 = vmatprep.subr.mxu0 0.0
        %443 = vmatpush1.msra.mxu0 0.0
        %444 = vmatprep.subr.mxu0 0.0
        %445 = vmatpush1.msra.mxu0 0.0
        %446 = vmatprep.subr.mxu0 0.0
        %447 = vmatpush1.msra.mxu0 0.0
        %448 = vmatprep.subr.mxu0 0.0
        %449 = vmatpush1.msra.mxu0 0.0
        %450 = vmatprep.subr.mxu0 0.0
        %451 = vmatpush1.msra.mxu0 0.0
        %452 = vmatprep.subr.mxu0 0.0
        %453 = vmatpush1.msra.mxu0 0.0
        %454 = vmatprep.subr.mxu0 0.0
        %455 = vmatpush1.msra.mxu0 0.0
        %456 = vmatprep.subr.mxu0 0.0
        %457 = vmatpush1.msra.mxu0 0.0
        %458 = vmatprep.subr.mxu0 0.0
        %459 = vmatpush1.msra.mxu0 0.0
        %460 = vmatprep.subr.mxu0 0.0
        %461 = vmatpush1.msra.mxu0 0.0
        %462 = vmatprep.subr.mxu0 0.0
        %463 = vmatpush1.msra.mxu0 0.0
        %464 = vmatprep.subr.mxu0 0.0
        %465 = vmatpush1.msra.mxu0 0.0
        %466 = vmatprep.subr.mxu0 0.0
        %467 = vmatpush1.msra.mxu0 0.0
        %468 = vmatprep.subr.mxu0 0.0
        %469 = vmatpush1.msra.mxu0 0.0
        %470 = vmatprep.subr.mxu0 0.0
        %471 = vmatpush1.msra.mxu0 0.0
        %472 = vmatprep.mubr.f32.mxu0 0.0
        %473 = vmatmul.mubr.f32.gmra.mrb[0].mxu0 %v406
        %v474 = vpop.f32.mrb[0].mxu0
        %v475 = vadd.f32 0.0, %v474
        %v476 = vpop.f32.mrb[0].mxu0
        %v477 = vadd.f32 0.0, %v476
        %478 = vdwg.mxu0
        %479 = vmatprep.subr.mxu0 %v399
        %480 = vmatpush1.msra.mxu0 %v398
        %481 = vmatprep.subr.mxu0 %v403
        %482 = vmatpush1.msra.mxu0 %v402
        %483 = vmatprep.subr.mxu0 0.0
        %484 = vmatpush1.msra.mxu0 0.0
        %485 = vmatprep.subr.mxu0 0.0
        %486 = vmatpush1.msra.mxu0 0.0
        %487 = vmatprep.subr.mxu0 0.0
        %488 = vmatpush1.msra.mxu0 0.0
        %489 = vmatprep.subr.mxu0 0.0
        %490 = vmatpush1.msra.mxu0 0.0
        %491 = vmatprep.subr.mxu0 0.0
        %492 = vmatpush1.msra.mxu0 0.0
        %493 = vmatprep.subr.mxu0 0.0
        %494 = vmatpush1.msra.mxu0 0.0
        %495 = vmatprep.subr.mxu0 0.0
        %496 = vmatpush1.msra.mxu0 0.0
        %497 = vmatprep.subr.mxu0 0.0
        %498 = vmatpush1.msra.mxu0 0.0
        %499 = vmatprep.subr.mxu0 0.0
        %500 = vmatpush1.msra.mxu0 0.0
        %501 = vmatprep.subr.mxu0 0.0
        %502 = vmatpush1.msra.mxu0 0.0
        %503 = vmatprep.subr.mxu0 0.0
        %504 = vmatpush1.msra.mxu0 0.0
        %505 = vmatprep.subr.mxu0 0.0
        %506 = vmatpush1.msra.mxu0 0.0
        %507 = vmatprep.subr.mxu0 0.0
        %508 = vmatpush1.msra.mxu0 0.0
        %509 = vmatprep.subr.mxu0 0.0
        %510 = vmatpush1.msra.mxu0 0.0
        %511 = vmatprep.subr.mxu0 0.0
        %512 = vmatpush1.msra.mxu0 0.0
        %513 = vmatprep.subr.mxu0 0.0
        %514 = vmatpush1.msra.mxu0 0.0
        %515 = vmatprep.subr.mxu0 0.0
        %516 = vmatpush1.msra.mxu0 0.0
        %517 = vmatprep.subr.mxu0 0.0
        %518 = vmatpush1.msra.mxu0 0.0
        %519 = vmatprep.subr.mxu0 0.0
        %520 = vmatpush1.msra.mxu0 0.0
        %521 = vmatprep.subr.mxu0 0.0
        %522 = vmatpush1.msra.mxu0 0.0
        %523 = vmatprep.subr.mxu0 0.0
        %524 = vmatpush1.msra.mxu0 0.0
        %525 = vmatprep.subr.mxu0 0.0
        %526 = vmatpush1.msra.mxu0 0.0
        %527 = vmatprep.subr.mxu0 0.0
        %528 = vmatpush1.msra.mxu0 0.0
        %529 = vmatprep.subr.mxu0 0.0
        %530 = vmatpush1.msra.mxu0 0.0
        %531 = vmatprep.subr.mxu0 0.0
        %532 = vmatpush1.msra.mxu0 0.0
        %533 = vmatprep.subr.mxu0 0.0
        %534 = vmatpush1.msra.mxu0 0.0
        %535 = vmatprep.subr.mxu0 0.0
        %536 = vmatpush1.msra.mxu0 0.0
        %537 = vmatprep.subr.mxu0 0.0
        %538 = vmatpush1.msra.mxu0 0.0
        %539 = vmatprep.subr.mxu0 0.0
        %540 = vmatpush1.msra.mxu0 0.0
        %541 = vmatprep.subr.mxu0 0.0
        %542 = vmatpush1.msra.mxu0 0.0
        %543 = vmatprep.mubr.f32.mxu0 0.0
        %544 = vmatmul.mubr.f32.gmra.mrb[0].mxu0 %v406
        %v545 = vpop.f32.mrb[0].mxu0
        %v546 = vadd.f32 0.0, %v545
        %v547 = vpop.f32.mrb[0].mxu0
        %v548 = vadd.f32 0.0, %v547
        %549 = vdwg.mxu0
        %vm550 = vcmask 261120
        %v552 = vsel %vm550, %v378, 0
        %554 = vmatprep.subr.mxu0 %v380
        %555 = vmatpush1.msra.mxu0 %v379
        %556 = vmatprep.subr.mxu0 %v384
        %557 = vmatpush1.msra.mxu0 %v383
        %558 = vmatprep.subr.mxu0 %v388
        %559 = vmatpush1.msra.mxu0 %v387
        %560 = vmatprep.subr.mxu0 %v392
        %561 = vmatpush1.msra.mxu0 %v391
        %562 = vmatprep.subr.mxu0 0.0
        %563 = vmatpush1.msra.mxu0 0.0
        %564 = vmatprep.subr.mxu0 0.0
        %565 = vmatpush1.msra.mxu0 0.0
        %566 = vmatprep.subr.mxu0 0.0
        %567 = vmatpush1.msra.mxu0 0.0
        %568 = vmatprep.subr.mxu0 0.0
        %569 = vmatpush1.msra.mxu0 0.0
        %570 = vmatprep.subr.mxu0 0.0
        %571 = vmatpush1.msra.mxu0 0.0
        %572 = vmatprep.subr.mxu0 0.0
        %573 = vmatpush1.msra.mxu0 0.0
        %574 = vmatprep.subr.mxu0 0.0
        %575 = vmatpush1.msra.mxu0 0.0
        %576 = vmatprep.subr.mxu0 0.0
        %577 = vmatpush1.msra.mxu0 0.0
        %578 = vmatprep.subr.mxu0 0.0
        %579 = vmatpush1.msra.mxu0 0.0
        %580 = vmatprep.subr.mxu0 0.0
        %581 = vmatpush1.msra.mxu0 0.0
        %582 = vmatprep.subr.mxu0 0.0
        %583 = vmatpush1.msra.mxu0 0.0
        %584 = vmatprep.subr.mxu0 0.0
        %585 = vmatpush1.msra.mxu0 0.0
        %586 = vmatprep.subr.mxu0 0.0
        %587 = vmatpush1.msra.mxu0 0.0
        %588 = vmatprep.subr.mxu0 0.0
        %589 = vmatpush1.msra.mxu0 0.0
        %590 = vmatprep.subr.mxu0 0.0
        %591 = vmatpush1.msra.mxu0 0.0
        %592 = vmatprep.subr.mxu0 0.0
        %593 = vmatpush1.msra.mxu0 0.0
        %594 = vmatprep.subr.mxu0 0.0
        %595 = vmatpush1.msra.mxu0 0.0
        %596 = vmatprep.subr.mxu0 0.0
        %597 = vmatpush1.msra.mxu0 0.0
        %598 = vmatprep.subr.mxu0 0.0
        %599 = vmatpush1.msra.mxu0 0.0
        %600 = vmatprep.subr.mxu0 0.0
        %601 = vmatpush1.msra.mxu0 0.0
        %602 = vmatprep.subr.mxu0 0.0
        %603 = vmatpush1.msra.mxu0 0.0
        %604 = vmatprep.subr.mxu0 0.0
        %605 = vmatpush1.msra.mxu0 0.0
        %606 = vmatprep.subr.mxu0 0.0
        %607 = vmatpush1.msra.mxu0 0.0
        %608 = vmatprep.subr.mxu0 0.0
        %609 = vmatpush1.msra.mxu0 0.0
        %610 = vmatprep.subr.mxu0 0.0
        %611 = vmatpush1.msra.mxu0 0.0
        %612 = vmatprep.subr.mxu0 0.0
        %613 = vmatpush1.msra.mxu0 0.0
        %614 = vmatprep.subr.mxu0 0.0
        %615 = vmatpush1.msra.mxu0 0.0
        %616 = vmatprep.subr.mxu0 0.0
        %617 = vmatpush1.msra.mxu0 0.0
        %618 = vmatprep.mubr.f32.mxu0 0.0
        %619 = vmatmul.mubr.f32.gmra.mrb[0].mxu0 %v552
        %v620 = vpop.f32.mrb[0].mxu0
        %v621 = vadd.f32 %v475, %v620
        %v622 = vpop.f32.mrb[0].mxu0
        %v623 = vadd.f32 %v477, %v622
        %624 = vdwg.mxu0
        %625 = vmatprep.subr.mxu0 %v382
        %626 = vmatpush1.msra.mxu0 %v381
        %627 = vmatprep.subr.mxu0 %v386
        %628 = vmatpush1.msra.mxu0 %v385
        %629 = vmatprep.subr.mxu0 %v390
        %630 = vmatpush1.msra.mxu0 %v389
        %631 = vmatprep.subr.mxu0 %v394
        %632 = vmatpush1.msra.mxu0 %v393
        %633 = vmatprep.subr.mxu0 0.0
        %634 = vmatpush1.msra.mxu0 0.0
        %635 = vmatprep.subr.mxu0 0.0
        %636 = vmatpush1.msra.mxu0 0.0
        %637 = vmatprep.subr.mxu0 0.0
        %638 = vmatpush1.msra.mxu0 0.0
        %639 = vmatprep.subr.mxu0 0.0
        %640 = vmatpush1.msra.mxu0 0.0
        %641 = vmatprep.subr.mxu0 0.0
        %642 = vmatpush1.msra.mxu0 0.0
        %643 = vmatprep.subr.mxu0 0.0
        %644 = vmatpush1.msra.mxu0 0.0
        %645 = vmatprep.subr.mxu0 0.0
        %646 = vmatpush1.msra.mxu0 0.0
        %647 = vmatprep.subr.mxu0 0.0
        %648 = vmatpush1.msra.mxu0 0.0
        %649 = vmatprep.subr.mxu0 0.0
        %650 = vmatpush1.msra.mxu0 0.0
        %651 = vmatprep.subr.mxu0 0.0
        %652 = vmatpush1.msra.mxu0 0.0
        %653 = vmatprep.subr.mxu0 0.0
        %654 = vmatpush1.msra.mxu0 0.0
        %655 = vmatprep.subr.mxu0 0.0
        %656 = vmatpush1.msra.mxu0 0.0
        %657 = vmatprep.subr.mxu0 0.0
        %658 = vmatpush1.msra.mxu0 0.0
        %659 = vmatprep.subr.mxu0 0.0
        %660 = vmatpush1.msra.mxu0 0.0
        %661 = vmatprep.subr.mxu0 0.0
        %662 = vmatpush1.msra.mxu0 0.0
        %663 = vmatprep.subr.mxu0 0.0
        %664 = vmatpush1.msra.mxu0 0.0
        %665 = vmatprep.subr.mxu0 0.0
        %666 = vmatpush1.msra.mxu0 0.0
        %667 = vmatprep.subr.mxu0 0.0
        %668 = vmatpush1.msra.mxu0 0.0
        %669 = vmatprep.subr.mxu0 0.0
        %670 = vmatpush1.msra.mxu0 0.0
        %671 = vmatprep.subr.mxu0 0.0
        %672 = vmatpush1.msra.mxu0 0.0
        %673 = vmatprep.subr.mxu0 0.0
        %674 = vmatpush1.msra.mxu0 0.0
        %675 = vmatprep.subr.mxu0 0.0
        %676 = vmatpush1.msra.mxu0 0.0
        %677 = vmatprep.subr.mxu0 0.0
        %678 = vmatpush1.msra.mxu0 0.0
        %679 = vmatprep.subr.mxu0 0.0
        %680 = vmatpush1.msra.mxu0 0.0
        %681 = vmatprep.subr.mxu0 0.0
        %682 = vmatpush1.msra.mxu0 0.0
        %683 = vmatprep.subr.mxu0 0.0
        %684 = vmatpush1.msra.mxu0 0.0
        %685 = vmatprep.subr.mxu0 0.0
        %686 = vmatpush1.msra.mxu0 0.0
        %687 = vmatprep.subr.mxu0 0.0
        %688 = vmatpush1.msra.mxu0 0.0
        %689 = vmatprep.mubr.f32.mxu0 0.0
        %690 = vmatmul.mubr.f32.gmra.mrb[0].mxu0 %v552
        %v691 = vpop.f32.mrb[0].mxu0
        %v692 = vadd.f32 %v546, %v691
        %v693 = vpop.f32.mrb[0].mxu0
        %v694 = vadd.f32 %v548, %v693
        %695 = vdwg.mxu0
        %v696 = vld [vmem:[%s5] sm:$0x1]
        %v697 = vld [vmem:[%s333] sm:$0xff]
        %v698 = vld [vmem:[%s333 + $0x8] sm:$0xff]
        %v699 = vld [vmem:[%s333 + $0x10] sm:$0xff]
        %v700 = vld [vmem:[%s333 + $0x18] sm:$0xff]
        %vm701 = vcmask 64512
        %v703 = vsel %vm701, %v696, 0
        %705 = vmatprep.subr.mxu0 %v698
        %706 = vmatpush1.msra.mxu0 %v697
        %707 = vmatprep.subr.mxu0 0.0
        %708 = vmatpush1.msra.mxu0 0.0
        %709 = vmatprep.subr.mxu0 0.0
        %710 = vmatpush1.msra.mxu0 0.0
        %711 = vmatprep.subr.mxu0 0.0
        %712 = vmatpush1.msra.mxu0 0.0
        %713 = vmatprep.subr.mxu0 0.0
        %714 = vmatpush1.msra.mxu0 0.0
        %715 = vmatprep.subr.mxu0 0.0
        %716 = vmatpush1.msra.mxu0 0.0
        %717 = vmatprep.subr.mxu0 0.0
        %718 = vmatpush1.msra.mxu0 0.0
        %719 = vmatprep.subr.mxu0 0.0
        %720 = vmatpush1.msra.mxu0 0.0
        %721 = vmatprep.subr.mxu0 0.0
        %722 = vmatpush1.msra.mxu0 0.0
        %723 = vmatprep.subr.mxu0 0.0
        %724 = vmatpush1.msra.mxu0 0.0
        %725 = vmatprep.subr.mxu0 0.0
        %726 = vmatpush1.msra.mxu0 0.0
        %727 = vmatprep.subr.mxu0 0.0
        %728 = vmatpush1.msra.mxu0 0.0
        %729 = vmatprep.subr.mxu0 0.0
        %730 = vmatpush1.msra.mxu0 0.0
        %731 = vmatprep.subr.mxu0 0.0
        %732 = vmatpush1.msra.mxu0 0.0
        %733 = vmatprep.subr.mxu0 0.0
        %734 = vmatpush1.msra.mxu0 0.0
        %735 = vmatprep.subr.mxu0 0.0
        %736 = vmatpush1.msra.mxu0 0.0
        %737 = vmatprep.subr.mxu0 0.0
        %738 = vmatpush1.msra.mxu0 0.0
        %739 = vmatprep.subr.mxu0 0.0
        %740 = vmatpush1.msra.mxu0 0.0
        %741 = vmatprep.subr.mxu0 0.0
        %742 = vmatpush1.msra.mxu0 0.0
        %743 = vmatprep.subr.mxu0 0.0
        %744 = vmatpush1.msra.mxu0 0.0
        %745 = vmatprep.subr.mxu0 0.0
        %746 = vmatpush1.msra.mxu0 0.0
        %747 = vmatprep.subr.mxu0 0.0
        %748 = vmatpush1.msra.mxu0 0.0
        %749 = vmatprep.subr.mxu0 0.0
        %750 = vmatpush1.msra.mxu0 0.0
        %751 = vmatprep.subr.mxu0 0.0
        %752 = vmatpush1.msra.mxu0 0.0
        %753 = vmatprep.subr.mxu0 0.0
        %754 = vmatpush1.msra.mxu0 0.0
        %755 = vmatprep.subr.mxu0 0.0
        %756 = vmatpush1.msra.mxu0 0.0
        %757 = vmatprep.subr.mxu0 0.0
        %758 = vmatpush1.msra.mxu0 0.0
        %759 = vmatprep.subr.mxu0 0.0
        %760 = vmatpush1.msra.mxu0 0.0
        %761 = vmatprep.subr.mxu0 0.0
        %762 = vmatpush1.msra.mxu0 0.0
        %763 = vmatprep.subr.mxu0 0.0
        %764 = vmatpush1.msra.mxu0 0.0
        %765 = vmatprep.subr.mxu0 0.0
        %766 = vmatpush1.msra.mxu0 0.0
        %767 = vmatprep.subr.mxu0 0.0
        %768 = vmatpush1.msra.mxu0 0.0
        %769 = vmatprep.mubr.f32.mxu0 0.0
        %770 = vmatmul.mubr.f32.gmra.mrb[0].mxu0 %v703
        %v771 = vpop.f32.mrb[0].mxu0
        %v772 = vadd.f32 0.0, %v771
        %v773 = vpop.f32.mrb[0].mxu0
        %v774 = vadd.f32 0.0, %v773
        %775 = vdwg.mxu0
        %776 = vmatprep.subr.mxu0 %v700
        %777 = vmatpush1.msra.mxu0 %v699
        %778 = vmatprep.subr.mxu0 0.0
        %779 = vmatpush1.msra.mxu0 0.0
        %780 = vmatprep.subr.mxu0 0.0
        %781 = vmatpush1.msra.mxu0 0.0
        %782 = vmatprep.subr.mxu0 0.0
        %783 = vmatpush1.msra.mxu0 0.0
        %784 = vmatprep.subr.mxu0 0.0
        %785 = vmatpush1.msra.mxu0 0.0
        %786 = vmatprep.subr.mxu0 0.0
        %787 = vmatpush1.msra.mxu0 0.0
        %788 = vmatprep.subr.mxu0 0.0
        %789 = vmatpush1.msra.mxu0 0.0
        %790 = vmatprep.subr.mxu0 0.0
        %791 = vmatpush1.msra.mxu0 0.0
        %792 = vmatprep.subr.mxu0 0.0
        %793 = vmatpush1.msra.mxu0 0.0
        %794 = vmatprep.subr.mxu0 0.0
        %795 = vmatpush1.msra.mxu0 0.0
        %796 = vmatprep.subr.mxu0 0.0
        %797 = vmatpush1.msra.mxu0 0.0
        %798 = vmatprep.subr.mxu0 0.0
        %799 = vmatpush1.msra.mxu0 0.0
        %800 = vmatprep.subr.mxu0 0.0
        %801 = vmatpush1.msra.mxu0 0.0
        %802 = vmatprep.subr.mxu0 0.0
        %803 = vmatpush1.msra.mxu0 0.0
        %804 = vmatprep.subr.mxu0 0.0
        %805 = vmatpush1.msra.mxu0 0.0
        %806 = vmatprep.subr.mxu0 0.0
        %807 = vmatpush1.msra.mxu0 0.0
        %808 = vmatprep.subr.mxu0 0.0
        %809 = vmatpush1.msra.mxu0 0.0
        %810 = vmatprep.subr.mxu0 0.0
        %811 = vmatpush1.msra.mxu0 0.0
        %812 = vmatprep.subr.mxu0 0.0
        %813 = vmatpush1.msra.mxu0 0.0
        %814 = vmatprep.subr.mxu0 0.0
        %815 = vmatpush1.msra.mxu0 0.0
        %816 = vmatprep.subr.mxu0 0.0
        %817 = vmatpush1.msra.mxu0 0.0
        %818 = vmatprep.subr.mxu0 0.0
        %819 = vmatpush1.msra.mxu0 0.0
        %820 = vmatprep.subr.mxu0 0.0
        %821 = vmatpush1.msra.mxu0 0.0
        %822 = vmatprep.subr.mxu0 0.0
        %823 = vmatpush1.msra.mxu0 0.0
        %824 = vmatprep.subr.mxu0 0.0
        %825 = vmatpush1.msra.mxu0 0.0
        %826 = vmatprep.subr.mxu0 0.0
        %827 = vmatpush1.msra.mxu0 0.0
        %828 = vmatprep.subr.mxu0 0.0
        %829 = vmatpush1.msra.mxu0 0.0
        %830 = vmatprep.subr.mxu0 0.0
        %831 = vmatpush1.msra.mxu0 0.0
        %832 = vmatprep.subr.mxu0 0.0
        %833 = vmatpush1.msra.mxu0 0.0
        %834 = vmatprep.subr.mxu0 0.0
        %835 = vmatpush1.msra.mxu0 0.0
        %836 = vmatprep.subr.mxu0 0.0
        %837 = vmatpush1.msra.mxu0 0.0
        %838 = vmatprep.subr.mxu0 0.0
        %839 = vmatpush1.msra.mxu0 0.0
        %840 = vmatprep.mubr.f32.mxu0 0.0
        %841 = vmatmul.mubr.f32.gmra.mrb[0].mxu0 %v703
        %v842 = vpop.f32.mrb[0].mxu0
        %v843 = vadd.f32 0.0, %v842
        %v844 = vpop.f32.mrb[0].mxu0
        %v845 = vadd.f32 0.0, %v844
        %846 = vdwg.mxu0
        %v847 = vadd.f32 %v621, %v772
        %v848 = vadd.f32 %v623, %v774
        %v849 = vadd.f32 %v692, %v843
        %v850 = vadd.f32 %v694, %v845
        %v851 = vld [vmem:[#allocation2] sm:$0x1]
        %853 = vset.pattern.permute.xlu0 0
        %854 = vperm.xlu0 %853, %v851
        %v855 = vpop.permute.xlu0 %854
        %v857 = vlaneseq
        %v858 = vshrl.u32 %v857, 7
        %v859 = vsub.s32 0, %v858
        %v860 = vrot.slane %v855, %v859
        %v861 = vadd.f32 %v847, %v860
        %v862 = vadd.f32 %v848, %v860
        %v863 = vadd.f32 %v849, %v860
        %v864 = vadd.f32 %v850, %v860
        %v869 = vcombine.low %v861, %v862
        %v870 = vcombine.low %v863, %v864
        %v872 = vunpack.c.l.s4 1966171168
        %v873 = vunpack.c.0.s8 %v872
        %v874 = vlaneseq
        %v875 = vshrl.u32 %v874, 7
        %v876 = vsub.s32 %v873, %v875
        %v877 = vrot.slane %v869, %v876
        %v879 = vunpack.c.l.s4 1966171168
        %v880 = vunpack.c.0.s8 %v879
        %v881 = vlaneseq
        %v882 = vshrl.u32 %v881, 7
        %v883 = vsub.s32 %v880, %v882
        %v884 = vrot.slane %v870, %v883
        %v885 = vcombine.low %v877, %v884
        %v887 = vunpack.c.l.s4 1966171168
        %v888 = vunpack.c.0.s8 %v887
        %v889 = vlaneseq
        %v890 = vshrl.u32 %v889, 7
        %v891 = vsub.s32 %v888, %v890
        %v892 = vrot.slane %v885, %v891
        %v894 = vlaneseq
        %vm895 = vcmp.ge.s32.totalorder %v894, 0
        %vm896 = vcmp.lt.s32.totalorder %v894, 512
        %vm897 = vmand %vm895, %vm896
        %898 = vst.msk [vmem:[%s373] sm:$0xf] %vm897, %v892
        %s899 = sand.u32 %s199, 1
        %s900 = scalar_lea.sflag [#allocation5], %s899
        %s901 = sand.u32 %s199, 1
        %s902 = smul.addr %s901, 4
        %s903 = scalar_lea.vmem [#allocation9], %s902
        // Predicated region
        $region61: #{tpu_custom_call.1} parent=47 // pred_check
          %p904 = pneg %p209
        $region62: #{tpu_custom_call.1} parent=47 // pred_check_branch
          %906 = sbr.rel (%p904) target = $region64
        $region63: #{tpu_custom_call.1} parent=47 // pred_region
          %s907 = smul.u32 4, %s29
          %s909 = ssub.s32 64, 64
          %910 = vsyncadd %s900, %s909
          %s911 = smul.addr %s907, 16
          %s912 = scalar_lea.hbm %s7, %s911
          %s914 = sshll.u32 %s903, 4
          %s915 = int_to_ptr.vmem [resolvable:$true] %s914
          %917 = dma.vmem_to_hbm [thread:$0]  %s915, 64, %s912, %s900
        $region64: #{tpu_custom_call.1} parent=47 // pred_fallthru
          _
      $region48: #{tpu_custom_call.1} parent=5 // pred_fallthru
        _
      %p918 = scmp.le.s32.totalorder 2, %s24
      // Predicated region
      $region65: #{tpu_custom_call.1} parent=5 // pred_check
        %p919 = pneg %p918
      $region66: #{tpu_custom_call.1} parent=5 // pred_check_branch
        %921 = sbr.rel (%p919) target = $region68
      $region67: #{tpu_custom_call.1} parent=5 // pred_region
        %s922 = ssub.s32 %s24, 2
        // Predicated region
        $region69: #{tpu_custom_call.1} parent=67 // pred_check
          %p923 = pneg %p215
        $region70: #{tpu_custom_call.1} parent=67 // pred_check_branch
          %925 = sbr.rel (%p923) target = $region72
        $region71: #{tpu_custom_call.1} parent=67 // pred_region
          %s926 = sand.u32 %s200, 1
          %s927 = scalar_lea.sflag [#allocation5], %s926
          %s928 = sand.u32 %s200, 1
          %s929 = smul.addr %s928, 4
          %s930 = scalar_lea.vmem [#allocation9], %s929
          %931 = dma.done %s927, 64
        $region72: #{tpu_custom_call.1} parent=67 // pred_fallthru
          _
      $region68: #{tpu_custom_call.1} parent=5 // pred_fallthru
        _
    $region6: #{tpu_custom_call.1} parent=1 // loop_footer
      %s28 = sadd.s32 1, %s24
    $region7: #{tpu_custom_call.1} parent=1 // loop_footer_branch
      %23 = sbr.rel target = $region3
    $region8: #{tpu_custom_call.1} parent=1 // loop_exit
      _
    %932 = vsyncpa [#allocation4], 1
    %s933 = scalar_lea.sflag [#allocation4], 1
    %934 = vsyncpa %s933, 1
    %935 = vsyncpa [#allocation7], 1
    %s936 = scalar_lea.sflag [#allocation7], 1
    %937 = vsyncpa %s936, 1
    %938 = vsyncpa [#allocation5], 1
    %s939 = scalar_lea.sflag [#allocation5], 1
    %940 = vsyncpa %s939, 1

</llo_original>
